<compile_context>
chip_gen: v7x
topology: tpu7x:2x2x1
jax: 0.10.0
libtpu: 0.0.40
codegen_flags: <defaults>
</compile_context>

<pallas_src>
import functools

import jax
import jax.numpy as jnp
from jax.experimental import pallas as pl
from jax.experimental.pallas import tpu as pltpu


def _silu(x):
    return x * jax.nn.sigmoid(x)


def _choose_batch_tile(B, L, c_in, c_out, budget_bytes=12 << 20):
    """Samples per grid step: as fat as the VMEM budget allows, keeping >= 2 grid steps
    when possible (so ('parallel',) can shard across 2 TensorCores on v7x) and keeping
    the row-block sublane-aligned (multiple of 8)."""
    def resident_bytes(bt):
        rows = bt * L
        # double-buffered x/out blocks + ~4 live (rows, c_out) f32 temporaries
        return 4 * rows * (2 * c_in + 2 * c_out + 4 * c_out)

    candidates = []
    for d in range(1, B + 1):
        if B % d:
            continue
        if d != B and (d * L) % 8 != 0:
            continue
        if resident_bytes(d) > budget_bytes:
            continue
        candidates.append(d)
    if not candidates:
        # TODO(synk): for very large L (v7x 64 MiB VMEM), tile L with a two-pass
        # GroupNorm (stats pass + normalize pass) instead of keeping full L per sample.
        return 1
    multi_step = [d for d in candidates if B // d >= 2]
    return max(multi_step) if multi_step else max(candidates)


def resnet_block_kernel(x_ref, te_ref,
                        w1_ref, b1_ref, g1_ref, be1_ref,
                        w2_ref, b2_ref, g2_ref, be2_ref,
                        wr_ref, br_ref,
                        wms_ref, bms_ref, wmh_ref, bmh_ref,
                        gcol_ref, gbc_ref, srow_ref, brow_ref,
                        o_ref, *, bt, n_per_group, gn_eps, matmul_dtype):
    f32 = jnp.float32
    x = x_ref[...]                                    # (R, C_in)  R = bt * L, lanes = channels

    def mm(a, b):
        # conv matmuls; optionally bf16 operands with f32 accumulation (v6e/v7x MXU).
        if matmul_dtype is not None:
            a = a.astype(matmul_dtype)
            b = b.astype(matmul_dtype)
        return jnp.dot(a, b, preferred_element_type=f32)

    srow = srow_ref[...]                              # (bt, R)  per-sample row-sum selector
    brow = brow_ref[...]                              # (R, bt)  per-sample row broadcast
    gcol = gcol_ref[...]                              # (C, G)   channel -> group collect
    gbc = gbc_ref[...]                                # (G, C)   group -> channel broadcast

    def group_norm(h, gamma, beta):
        # Two-pass per-(sample, group) statistics (avoids E[x^2]-E[x]^2 cancellation).
        ch_sum = jnp.dot(srow, h, preferred_element_type=f32)                     # (bt, C)
        mean_g = jnp.dot(ch_sum, gcol, preferred_element_type=f32) / n_per_group  # (bt, G)
        mean_r = jnp.dot(brow, jnp.dot(mean_g, gbc, preferred_element_type=f32),
                         preferred_element_type=f32)                              # (R, C)
        d = h - mean_r
        ch_sq = jnp.dot(srow, d * d, preferred_element_type=f32)                  # (bt, C)
        var_g = jnp.dot(ch_sq, gcol, preferred_element_type=f32) / n_per_group    # (bt, G)
        inv_r = jnp.dot(brow, jnp.dot(jax.lax.rsqrt(var_g + gn_eps), gbc,
                                      preferred_element_type=f32),
                        preferred_element_type=f32)                               # (R, C)
        return d * inv_r * gamma + beta

    # ---- time-embedding MLP: SiLU -> Linear (lane-dense: dim_out on lanes) ----
    i = pl.program_id(0)
    t = _silu(te_ref[pl.ds(i * bt, bt), :].astype(f32))                           # (bt, T)
    scale = jnp.dot(t, wms_ref[...], preferred_element_type=f32) + bms_ref[...]   # (bt, C)
    shift = jnp.dot(t, wmh_ref[...], preferred_element_type=f32) + bmh_ref[...]   # (bt, C)
    scale_r = jnp.dot(brow, scale, preferred_element_type=f32)                    # (R, C)
    shift_r = jnp.dot(brow, shift, preferred_element_type=f32)                    # (R, C)

    # ---- block1: (pre-standardized) 1x1 conv -> GroupNorm -> scale/shift -> SiLU ----
    h = mm(x, w1_ref[...]) + b1_ref[...]                                          # (R, C)
    h = group_norm(h, g1_ref[...], be1_ref[...])
    h = _silu(h * (scale_r + 1.0) + shift_r)

    # ---- block2: (pre-standardized) 1x1 conv -> GroupNorm -> SiLU ----
    h2 = mm(h, w2_ref[...]) + b2_ref[...]
    h2 = group_norm(h2, g2_ref[...], be2_ref[...])
    h2 = _silu(h2)

    # ---- residual 1x1 conv last (minimizes live temporaries before the store) ----
    o_ref[...] = (h2 + mm(x, wr_ref[...]) + br_ref[...]).astype(o_ref.dtype)


def resnet_block(x, time_emb, params, *, groups, matmul_dtype=None, batch_tile=None):
    B, C_in, L = x.shape
    dim_out = params["w1"].shape[0]
    f32 = jnp.float32

    # ---- grid-invariant preprocessing hoisted out of the kernel ----
    # WeightStandardizedConv2d: eps keyed on the activation dtype (1e-5 f32, 1e-3 otherwise).
    ws_eps = 1e-5 if x.dtype == jnp.float32 else 1e-3

    def ws(w):
        m = jnp.mean(w, axis=1, keepdims=True)
        v = jnp.mean((w - m) ** 2, axis=1, keepdims=True)      # unbiased=False
        return (w - m) * jax.lax.rsqrt(v + ws_eps)

    def row(v):                                                 # (C, 1) -> (1, C) lane-dense
        return v.reshape(1, -1).astype(f32)

    w1t = ws(params["w1"].astype(f32)).T                        # (C_in, dim_out)
    w2t = ws(params["w2"].astype(f32)).T                        # (dim_out, dim_out)
    wrt = params["wr"].astype(f32).T                            # (C_in, dim_out)
    b1, g1, be1 = row(params["b1"]), row(params["g1"]), row(params["be1"])
    b2, g2, be2 = row(params["b2"]), row(params["g2"]), row(params["be2"])
    br = row(params["br"])

    wm = params["wm"].astype(f32)                               # (2*dim_out, T)
    bm = params["bm"].astype(f32)                               # (2*dim_out, 1)
    wms, wmh = wm[:dim_out].T, wm[dim_out:].T                   # (T, dim_out) each
    bms, bmh = row(bm[:dim_out]), row(bm[dim_out:])

    # Group collect / broadcast matrices (tiny, grid-invariant).
    ch = jnp.arange(dim_out)
    gcol = (ch[:, None] // (dim_out // groups)
            == jnp.arange(groups)[None, :]).astype(f32)         # (dim_out, groups)
    gbc = gcol.T                                                # (groups, dim_out)

    # ---- batch tiling: bt samples (bt*L lane-dense rows) per grid step ----
    bt = batch_tile if batch_tile is not None else _choose_batch_tile(B, L, C_in, dim_out)
    assert B % bt == 0
    R = bt * L
    r = jnp.arange(R)
    srow = (r[None, :] // L == jnp.arange(bt)[:, None]).astype(f32)   # (bt, R)
    brow = srow.T                                                     # (R, bt)

    # ---- lane-dense layout: rows = batch*length, lanes = channels ----
    x2d = jnp.transpose(x, (0, 2, 1)).reshape(B * L, C_in).astype(f32)
    te = time_emb.astype(f32)                                   # (B, T) — small, kept whole in VMEM

    n_per_group = float((dim_out // groups) * L)

    kernel = functools.partial(resnet_block_kernel, bt=bt, n_per_group=n_per_group,
                               gn_eps=1e-5, matmul_dtype=matmul_dtype)

    param_arrays = [w1t, b1, g1, be1, w2t, b2, g2, be2, wrt, br,
                    wms, bms, wmh, bmh, gcol, gbc, srow, brow]

    def full_spec(a):
        nd = a.ndim
        return pl.BlockSpec(a.shape, lambda b, _n=nd: (0,) * _n)

    out2d = pl.pallas_call(
        kernel,
        out_shape=jax.ShapeDtypeStruct((B * L, dim_out), x.dtype),
        grid=(B // bt,),
        in_specs=[pl.BlockSpec((R, C_in), lambda b: (b, 0)),
                  full_spec(te)]
                 + [full_spec(a) for a in param_arrays],
        out_specs=pl.BlockSpec((R, dim_out), lambda b: (b, 0)),
        compiler_params=pltpu.CompilerParams(
            dimension_semantics=("parallel",)),
    )(x2d, te, *param_arrays)

    return jnp.transpose(out2d.reshape(B, L, dim_out), (0, 2, 1)).astype(x.dtype)


def resnet_block_reference(x, time_emb, p, *, groups):
    """Pure-JAX reference mirroring the PyTorch forward (NCL layout)."""
    dim_out = p["w1"].shape[0]

    def ws_conv(x, w, b):
        mw = w.mean(axis=1, keepdims=True)
        vw = ((w - mw) ** 2).mean(axis=1, keepdims=True)
        wn = (w - mw) / jnp.sqrt(vw + 1e-5)
        return jnp.einsum("oc,bcl->bol", wn, x) + b[None, :, :]

    def gn(h, gamma, beta):
        B, C, L = h.shape
        hr = h.reshape(B, groups, (C // groups) * L)
        m = hr.mean(-1, keepdims=True)
        v = hr.var(-1, keepdims=True)
        hn = ((hr - m) / jnp.sqrt(v + 1e-5)).reshape(B, C, L)
        return hn * gamma[None, :, :] + beta[None, :, :]

    t = time_emb * jax.nn.sigmoid(time_emb)
    ss = (t @ p["wm"].T + p["bm"][:, 0][None, :])[:, :, None]     # (B, 2C, 1)
    scale, shift = ss[:, :dim_out], ss[:, dim_out:]

    h = ws_conv(x, p["w1"], p["b1"])
    h = gn(h, p["g1"], p["be1"])
    h = h * (scale + 1.0) + shift
    h = h * jax.nn.sigmoid(h)

    h2 = ws_conv(h, p["w2"], p["b2"])
    h2 = gn(h2, p["g2"], p["be2"])
    h2 = h2 * jax.nn.sigmoid(h2)

    res = jnp.einsum("oc,bcl->bol", p["wr"], x) + p["br"][None, :, :]
    return h2 + res


if __name__ == "__main__":
    # Small shapes consistent with the module (Conv1d -> NCL input).
    B, dim, dim_out, L, T, groups = 2, 4, 8, 16, 32, 8

    key = jax.random.PRNGKey(0)
    ks = jax.random.split(key, 16)

    x = jax.random.normal(ks[0], (B, dim, L), dtype=jnp.float32)
    time_emb = jax.random.normal(ks[1], (B, T), dtype=jnp.float32)

    # Deterministic synthetic parameters (shapes from the module's __init__).
    params = {
        # block1: WeightStandardizedConv2d(dim, dim_out, 1) + GroupNorm(groups, dim_out)
        "w1": jax.random.normal(ks[2], (dim_out, dim), dtype=jnp.float32) * 0.3,
        "b1": jax.random.normal(ks[3], (dim_out, 1), dtype=jnp.float32) * 0.1,
        "g1": 1.0 + jax.random.normal(ks[4], (dim_out, 1), dtype=jnp.float32) * 0.1,
        "be1": jax.random.normal(ks[5], (dim_out, 1), dtype=jnp.float32) * 0.1,
        # block2: WeightStandardizedConv2d(dim_out, dim_out, 1) + GroupNorm(groups, dim_out)
        "w2": jax.random.normal(ks[6], (dim_out, dim_out), dtype=jnp.float32) * 0.3,
        "b2": jax.random.normal(ks[7], (dim_out, 1), dtype=jnp.float32) * 0.1,
        "g2": 1.0 + jax.random.normal(ks[8], (dim_out, 1), dtype=jnp.float32) * 0.1,
        "be2": jax.random.normal(ks[9], (dim_out, 1), dtype=jnp.float32) * 0.1,
        # res_conv: Conv1d(dim, dim_out, 1)   (dim != dim_out)
        "wr": jax.random.normal(ks[10], (dim_out, dim), dtype=jnp.float32) * 0.3,
        "br": jax.random.normal(ks[11], (dim_out, 1), dtype=jnp.float32) * 0.1,
        # mlp: Linear(time_emb_dim, dim_out * 2)
        "wm": jax.random.normal(ks[12], (2 * dim_out, T), dtype=jnp.float32) * 0.1,
        "bm": jax.random.normal(ks[13], (2 * dim_out, 1), dtype=jnp.float32) * 0.1,
    }

    out = resnet_block(x, time_emb, params, groups=groups)
    out = jax.block_until_ready(out)

    ref = resnet_block_reference(x, time_emb, params, groups=groups)
    assert out.shape == (B, dim_out, L)
    assert jnp.allclose(out, ref, atol=1e-4, rtol=1e-4), \
        f"max abs err {jnp.max(jnp.abs(out - ref))}"

    print("KERNEL_OK")
</pallas_src>

<mosaic_0001>
module attributes {stable_mosaic.version = 11 : i64} {
  func.func @resnet_block_kernel(%arg0: i32, %arg1: memref<16x4xf32, #tpu.memory_space<vmem>>, %arg2: memref<2x32xf32, #tpu.memory_space<vmem>>, %arg3: memref<4x8xf32, #tpu.memory_space<vmem>>, %arg4: memref<1x8xf32, #tpu.memory_space<vmem>>, %arg5: memref<1x8xf32, #tpu.memory_space<vmem>>, %arg6: memref<1x8xf32, #tpu.memory_space<vmem>>, %arg7: memref<8x8xf32, #tpu.memory_space<vmem>>, %arg8: memref<1x8xf32, #tpu.memory_space<vmem>>, %arg9: memref<1x8xf32, #tpu.memory_space<vmem>>, %arg10: memref<1x8xf32, #tpu.memory_space<vmem>>, %arg11: memref<4x8xf32, #tpu.memory_space<vmem>>, %arg12: memref<1x8xf32, #tpu.memory_space<vmem>>, %arg13: memref<32x8xf32, #tpu.memory_space<vmem>>, %arg14: memref<1x8xf32, #tpu.memory_space<vmem>>, %arg15: memref<32x8xf32, #tpu.memory_space<vmem>>, %arg16: memref<1x8xf32, #tpu.memory_space<vmem>>, %arg17: memref<8x8xf32, #tpu.memory_space<vmem>>, %arg18: memref<8x8xf32, #tpu.memory_space<vmem>>, %arg19: memref<1x16xf32, #tpu.memory_space<vmem>>, %arg20: memref<16x1xf32, #tpu.memory_space<vmem>>, %arg21: memref<16x8xf32, #tpu.memory_space<vmem>>) attributes {dimension_semantics = [#tpu.dimension_semantics<parallel>], iteration_bounds = array<i64: 2>, scalar_prefetch = 0 : i64, scratch_operands = 0 : i64, tpu.core_type = #tpu.core_type<tc>, window_params = [{transform_indices = @transform_0, window_bounds = array<i64: 16, 4>}, {pipeline_mode = #tpu.pipeline_mode<synchronous>, transform_indices = @transform_1, window_bounds = array<i64: 2, 32>}, {pipeline_mode = #tpu.pipeline_mode<synchronous>, transform_indices = @transform_2, window_bounds = array<i64: 4, 8>}, {pipeline_mode = #tpu.pipeline_mode<synchronous>, transform_indices = @transform_3, window_bounds = array<i64: 1, 8>}, {pipeline_mode = #tpu.pipeline_mode<synchronous>, transform_indices = @transform_4, window_bounds = array<i64: 1, 8>}, {pipeline_mode = #tpu.pipeline_mode<synchronous>, transform_indices = @transform_5, window_bounds = array<i64: 1, 8>}, {pipeline_mode = #tpu.pipeline_mode<synchronous>, transform_indices = @transform_6, window_bounds = array<i64: 8, 8>}, {pipeline_mode = #tpu.pipeline_mode<synchronous>, transform_indices = @transform_7, window_bounds = array<i64: 1, 8>}, {pipeline_mode = #tpu.pipeline_mode<synchronous>, transform_indices = @transform_8, window_bounds = array<i64: 1, 8>}, {pipeline_mode = #tpu.pipeline_mode<synchronous>, transform_indices = @transform_9, window_bounds = array<i64: 1, 8>}, {pipeline_mode = #tpu.pipeline_mode<synchronous>, transform_indices = @transform_10, window_bounds = array<i64: 4, 8>}, {pipeline_mode = #tpu.pipeline_mode<synchronous>, transform_indices = @transform_11, window_bounds = array<i64: 1, 8>}, {pipeline_mode = #tpu.pipeline_mode<synchronous>, transform_indices = @transform_12, window_bounds = array<i64: 32, 8>}, {pipeline_mode = #tpu.pipeline_mode<synchronous>, transform_indices = @transform_13, window_bounds = array<i64: 1, 8>}, {pipeline_mode = #tpu.pipeline_mode<synchronous>, transform_indices = @transform_14, window_bounds = array<i64: 32, 8>}, {pipeline_mode = #tpu.pipeline_mode<synchronous>, transform_indices = @transform_15, window_bounds = array<i64: 1, 8>}, {pipeline_mode = #tpu.pipeline_mode<synchronous>, transform_indices = @transform_16, window_bounds = array<i64: 8, 8>}, {pipeline_mode = #tpu.pipeline_mode<synchronous>, transform_indices = @transform_17, window_bounds = array<i64: 8, 8>}, {pipeline_mode = #tpu.pipeline_mode<synchronous>, transform_indices = @transform_18, window_bounds = array<i64: 1, 16>}, {pipeline_mode = #tpu.pipeline_mode<synchronous>, transform_indices = @transform_19, window_bounds = array<i64: 16, 1>}, {transform_indices = @transform_20, window_bounds = array<i64: 16, 8>}]} {
    %c0 = arith.constant 0 : index
    %c0_0 = arith.constant 0 : index
    %0 = vector.load %arg1[%c0, %c0_0] : memref<16x4xf32, #tpu.memory_space<vmem>>, vector<16x4xf32>
    %c0_1 = arith.constant 0 : index
    %c0_2 = arith.constant 0 : index
    %1 = vector.load %arg19[%c0_1, %c0_2] : memref<1x16xf32, #tpu.memory_space<vmem>>, vector<1x16xf32>
    %c0_3 = arith.constant 0 : index
    %c0_4 = arith.constant 0 : index
    %2 = vector.load %arg20[%c0_3, %c0_4] : memref<16x1xf32, #tpu.memory_space<vmem>>, vector<16x1xf32>
    %c0_5 = arith.constant 0 : index
    %c0_6 = arith.constant 0 : index
    %3 = vector.load %arg17[%c0_5, %c0_6] : memref<8x8xf32, #tpu.memory_space<vmem>>, vector<8x8xf32>
    %c0_7 = arith.constant 0 : index
    %c0_8 = arith.constant 0 : index
    %4 = vector.load %arg18[%c0_7, %c0_8] : memref<8x8xf32, #tpu.memory_space<vmem>>, vector<8x8xf32>
    %c1_i32 = arith.constant 1 : i32
    %5 = arith.muli %arg0, %c1_i32 : i32
    %6 = arith.index_cast %5 : i32 to index
    %c0_9 = arith.constant 0 : index
    %7 = vector.load %arg2[%6, %c0_9] : memref<2x32xf32, #tpu.memory_space<vmem>>, vector<1x32xf32>
    %8 = arith.negf %7 : vector<1x32xf32>
    %9 = math.exp %8 : vector<1x32xf32>
    %cst = arith.constant 1.000000e+00 : f32
    %10 = vector.broadcast %cst : f32 to vector<1x32xf32>
    %11 = arith.addf %10, %9 : vector<1x32xf32>
    %12 = arith.divf %10, %11 : vector<1x32xf32>
    %13 = arith.mulf %7, %12 : vector<1x32xf32>
    %c0_10 = arith.constant 0 : index
    %c0_11 = arith.constant 0 : index
    %14 = vector.load %arg13[%c0_10, %c0_11] : memref<32x8xf32, #tpu.memory_space<vmem>>, vector<32x8xf32>
    %cst_12 = arith.constant dense<0.000000e+00> : vector<1x8xf32>
    %15 = tpu.matmul %13, %14, %cst_12 {dimension_numbers = #tpu.dot_dimension_numbers<[1], [0], [0], [1], [0, 0, 1, 1], [], []>} : vector<1x32xf32>, vector<32x8xf32>, vector<1x8xf32> -> vector<1x8xf32>
    %c0_13 = arith.constant 0 : index
    %c0_14 = arith.constant 0 : index
    %16 = vector.load %arg14[%c0_13, %c0_14] : memref<1x8xf32, #tpu.memory_space<vmem>>, vector<1x8xf32>
    %17 = arith.addf %15, %16 : vector<1x8xf32>
    %c0_15 = arith.constant 0 : index
    %c0_16 = arith.constant 0 : index
    %18 = vector.load %arg15[%c0_15, %c0_16] : memref<32x8xf32, #tpu.memory_space<vmem>>, vector<32x8xf32>
    %cst_17 = arith.constant dense<0.000000e+00> : vector<1x8xf32>
    %19 = tpu.matmul %13, %18, %cst_17 {dimension_numbers = #tpu.dot_dimension_numbers<[1], [0], [0], [1], [0, 0, 1, 1], [], []>} : vector<1x32xf32>, vector<32x8xf32>, vector<1x8xf32> -> vector<1x8xf32>
    %c0_18 = arith.constant 0 : index
    %c0_19 = arith.constant 0 : index
    %20 = vector.load %arg16[%c0_18, %c0_19] : memref<1x8xf32, #tpu.memory_space<vmem>>, vector<1x8xf32>
    %21 = arith.addf %19, %20 : vector<1x8xf32>
    %cst_20 = arith.constant dense<0.000000e+00> : vector<16x8xf32>
    %22 = tpu.matmul %2, %17, %cst_20 {dimension_numbers = #tpu.dot_dimension_numbers<[1], [0], [0], [1], [0, 0, 1, 1], [], []>} : vector<16x1xf32>, vector<1x8xf32>, vector<16x8xf32> -> vector<16x8xf32>
    %cst_21 = arith.constant dense<0.000000e+00> : vector<16x8xf32>
    %23 = tpu.matmul %2, %21, %cst_21 {dimension_numbers = #tpu.dot_dimension_numbers<[1], [0], [0], [1], [0, 0, 1, 1], [], []>} : vector<16x1xf32>, vector<1x8xf32>, vector<16x8xf32> -> vector<16x8xf32>
    %c0_22 = arith.constant 0 : index
    %c0_23 = arith.constant 0 : index
    %24 = vector.load %arg3[%c0_22, %c0_23] : memref<4x8xf32, #tpu.memory_space<vmem>>, vector<4x8xf32>
    %cst_24 = arith.constant dense<0.000000e+00> : vector<16x8xf32>
    %25 = tpu.matmul %0, %24, %cst_24 {dimension_numbers = #tpu.dot_dimension_numbers<[1], [0], [0], [1], [0, 0, 1, 1], [], []>} : vector<16x4xf32>, vector<4x8xf32>, vector<16x8xf32> -> vector<16x8xf32>
    %c0_25 = arith.constant 0 : index
    %c0_26 = arith.constant 0 : index
    %26 = vector.load %arg4[%c0_25, %c0_26] : memref<1x8xf32, #tpu.memory_space<vmem>>, vector<1x8xf32>
    %27 = vector.broadcast %26 : vector<1x8xf32> to vector<16x8xf32>
    %28 = arith.addf %25, %27 : vector<16x8xf32>
    %c0_27 = arith.constant 0 : index
    %c0_28 = arith.constant 0 : index
    %29 = vector.load %arg5[%c0_27, %c0_28] : memref<1x8xf32, #tpu.memory_space<vmem>>, vector<1x8xf32>
    %c0_29 = arith.constant 0 : index
    %c0_30 = arith.constant 0 : index
    %30 = vector.load %arg6[%c0_29, %c0_30] : memref<1x8xf32, #tpu.memory_space<vmem>>, vector<1x8xf32>
    %cst_31 = arith.constant dense<0.000000e+00> : vector<1x8xf32>
    %31 = tpu.matmul %1, %28, %cst_31 {dimension_numbers = #tpu.dot_dimension_numbers<[1], [0], [0], [1], [0, 0, 1, 1], [], []>} : vector<1x16xf32>, vector<16x8xf32>, vector<1x8xf32> -> vector<1x8xf32>
    %cst_32 = arith.constant dense<0.000000e+00> : vector<1x8xf32>
    %32 = tpu.matmul %31, %3, %cst_32 {dimension_numbers = #tpu.dot_dimension_numbers<[1], [0], [0], [1], [0, 0, 1, 1], [], []>} : vector<1x8xf32>, vector<8x8xf32>, vector<1x8xf32> -> vector<1x8xf32>
    %cst_33 = arith.constant 1.600000e+01 : f32
    %33 = vector.broadcast %cst_33 : f32 to vector<1x8xf32>
    %34 = arith.divf %32, %33 : vector<1x8xf32>
    %cst_34 = arith.constant dense<0.000000e+00> : vector<1x8xf32>
    %35 = tpu.matmul %34, %4, %cst_34 {dimension_numbers = #tpu.dot_dimension_numbers<[1], [0], [0], [1], [0, 0, 1, 1], [], []>} : vector<1x8xf32>, vector<8x8xf32>, vector<1x8xf32> -> vector<1x8xf32>
    %cst_35 = arith.constant dense<0.000000e+00> : vector<16x8xf32>
    %36 = tpu.matmul %2, %35, %cst_35 {dimension_numbers = #tpu.dot_dimension_numbers<[1], [0], [0], [1], [0, 0, 1, 1], [], []>} : vector<16x1xf32>, vector<1x8xf32>, vector<16x8xf32> -> vector<16x8xf32>
    %37 = arith.subf %28, %36 : vector<16x8xf32>
    %38 = arith.mulf %37, %37 : vector<16x8xf32>
    %cst_36 = arith.constant dense<0.000000e+00> : vector<1x8xf32>
    %39 = tpu.matmul %1, %38, %cst_36 {dimension_numbers = #tpu.dot_dimension_numbers<[1], [0], [0], [1], [0, 0, 1, 1], [], []>} : vector<1x16xf32>, vector<16x8xf32>, vector<1x8xf32> -> vector<1x8xf32>
    %cst_37 = arith.constant dense<0.000000e+00> : vector<1x8xf32>
    %40 = tpu.matmul %39, %3, %cst_37 {dimension_numbers = #tpu.dot_dimension_numbers<[1], [0], [0], [1], [0, 0, 1, 1], [], []>} : vector<1x8xf32>, vector<8x8xf32>, vector<1x8xf32> -> vector<1x8xf32>
    %cst_38 = arith.constant 1.600000e+01 : f32
    %41 = vector.broadcast %cst_38 : f32 to vector<1x8xf32>
    %42 = arith.divf %40, %41 : vector<1x8xf32>
    %cst_39 = arith.constant 9.99999974E-6 : f32
    %43 = vector.broadcast %cst_39 : f32 to vector<1x8xf32>
    %44 = arith.addf %42, %43 : vector<1x8xf32>
    %45 = math.rsqrt %44 : vector<1x8xf32>
    %cst_40 = arith.constant dense<0.000000e+00> : vector<1x8xf32>
    %46 = tpu.matmul %45, %4, %cst_40 {dimension_numbers = #tpu.dot_dimension_numbers<[1], [0], [0], [1], [0, 0, 1, 1], [], []>} : vector<1x8xf32>, vector<8x8xf32>, vector<1x8xf32> -> vector<1x8xf32>
    %cst_41 = arith.constant dense<0.000000e+00> : vector<16x8xf32>
    %47 = tpu.matmul %2, %46, %cst_41 {dimension_numbers = #tpu.dot_dimension_numbers<[1], [0], [0], [1], [0, 0, 1, 1], [], []>} : vector<16x1xf32>, vector<1x8xf32>, vector<16x8xf32> -> vector<16x8xf32>
    %48 = arith.mulf %37, %47 : vector<16x8xf32>
    %49 = vector.broadcast %29 : vector<1x8xf32> to vector<16x8xf32>
    %50 = arith.mulf %48, %49 : vector<16x8xf32>
    %51 = vector.broadcast %30 : vector<1x8xf32> to vector<16x8xf32>
    %52 = arith.addf %50, %51 : vector<16x8xf32>
    %cst_42 = arith.constant 1.000000e+00 : f32
    %53 = vector.broadcast %cst_42 : f32 to vector<16x8xf32>
    %54 = arith.addf %22, %53 : vector<16x8xf32>
    %55 = arith.mulf %52, %54 : vector<16x8xf32>
    %56 = arith.addf %55, %23 : vector<16x8xf32>
    %57 = arith.negf %56 : vector<16x8xf32>
    %58 = math.exp %57 : vector<16x8xf32>
    %cst_43 = arith.constant 1.000000e+00 : f32
    %59 = vector.broadcast %cst_43 : f32 to vector<16x8xf32>
    %60 = arith.addf %59, %58 : vector<16x8xf32>
    %61 = arith.divf %59, %60 : vector<16x8xf32>
    %62 = arith.mulf %56, %61 : vector<16x8xf32>
    %c0_44 = arith.constant 0 : index
    %c0_45 = arith.constant 0 : index
    %63 = vector.load %arg7[%c0_44, %c0_45] : memref<8x8xf32, #tpu.memory_space<vmem>>, vector<8x8xf32>
    %cst_46 = arith.constant dense<0.000000e+00> : vector<16x8xf32>
    %64 = tpu.matmul %62, %63, %cst_46 {dimension_numbers = #tpu.dot_dimension_numbers<[1], [0], [0], [1], [0, 0, 1, 1], [], []>} : vector<16x8xf32>, vector<8x8xf32>, vector<16x8xf32> -> vector<16x8xf32>
    %c0_47 = arith.constant 0 : index
    %c0_48 = arith.constant 0 : index
    %65 = vector.load %arg8[%c0_47, %c0_48] : memref<1x8xf32, #tpu.memory_space<vmem>>, vector<1x8xf32>
    %66 = vector.broadcast %65 : vector<1x8xf32> to vector<16x8xf32>
    %67 = arith.addf %64, %66 : vector<16x8xf32>
    %c0_49 = arith.constant 0 : index
    %c0_50 = arith.constant 0 : index
    %68 = vector.load %arg9[%c0_49, %c0_50] : memref<1x8xf32, #tpu.memory_space<vmem>>, vector<1x8xf32>
    %c0_51 = arith.constant 0 : index
    %c0_52 = arith.constant 0 : index
    %69 = vector.load %arg10[%c0_51, %c0_52] : memref<1x8xf32, #tpu.memory_space<vmem>>, vector<1x8xf32>
    %cst_53 = arith.constant dense<0.000000e+00> : vector<1x8xf32>
    %70 = tpu.matmul %1, %67, %cst_53 {dimension_numbers = #tpu.dot_dimension_numbers<[1], [0], [0], [1], [0, 0, 1, 1], [], []>} : vector<1x16xf32>, vector<16x8xf32>, vector<1x8xf32> -> vector<1x8xf32>
    %cst_54 = arith.constant dense<0.000000e+00> : vector<1x8xf32>
    %71 = tpu.matmul %70, %3, %cst_54 {dimension_numbers = #tpu.dot_dimension_numbers<[1], [0], [0], [1], [0, 0, 1, 1], [], []>} : vector<1x8xf32>, vector<8x8xf32>, vector<1x8xf32> -> vector<1x8xf32>
    %cst_55 = arith.constant 1.600000e+01 : f32
    %72 = vector.broadcast %cst_55 : f32 to vector<1x8xf32>
    %73 = arith.divf %71, %72 : vector<1x8xf32>
    %cst_56 = arith.constant dense<0.000000e+00> : vector<1x8xf32>
    %74 = tpu.matmul %73, %4, %cst_56 {dimension_numbers = #tpu.dot_dimension_numbers<[1], [0], [0], [1], [0, 0, 1, 1], [], []>} : vector<1x8xf32>, vector<8x8xf32>, vector<1x8xf32> -> vector<1x8xf32>
    %cst_57 = arith.constant dense<0.000000e+00> : vector<16x8xf32>
    %75 = tpu.matmul %2, %74, %cst_57 {dimension_numbers = #tpu.dot_dimension_numbers<[1], [0], [0], [1], [0, 0, 1, 1], [], []>} : vector<16x1xf32>, vector<1x8xf32>, vector<16x8xf32> -> vector<16x8xf32>
    %76 = arith.subf %67, %75 : vector<16x8xf32>
    %77 = arith.mulf %76, %76 : vector<16x8xf32>
    %cst_58 = arith.constant dense<0.000000e+00> : vector<1x8xf32>
    %78 = tpu.matmul %1, %77, %cst_58 {dimension_numbers = #tpu.dot_dimension_numbers<[1], [0], [0], [1], [0, 0, 1, 1], [], []>} : vector<1x16xf32>, vector<16x8xf32>, vector<1x8xf32> -> vector<1x8xf32>
    %cst_59 = arith.constant dense<0.000000e+00> : vector<1x8xf32>
    %79 = tpu.matmul %78, %3, %cst_59 {dimension_numbers = #tpu.dot_dimension_numbers<[1], [0], [0], [1], [0, 0, 1, 1], [], []>} : vector<1x8xf32>, vector<8x8xf32>, vector<1x8xf32> -> vector<1x8xf32>
    %cst_60 = arith.constant 1.600000e+01 : f32
    %80 = vector.broadcast %cst_60 : f32 to vector<1x8xf32>
    %81 = arith.divf %79, %80 : vector<1x8xf32>
    %cst_61 = arith.constant 9.99999974E-6 : f32
    %82 = vector.broadcast %cst_61 : f32 to vector<1x8xf32>
    %83 = arith.addf %81, %82 : vector<1x8xf32>
    %84 = math.rsqrt %83 : vector<1x8xf32>
    %cst_62 = arith.constant dense<0.000000e+00> : vector<1x8xf32>
    %85 = tpu.matmul %84, %4, %cst_62 {dimension_numbers = #tpu.dot_dimension_numbers<[1], [0], [0], [1], [0, 0, 1, 1], [], []>} : vector<1x8xf32>, vector<8x8xf32>, vector<1x8xf32> -> vector<1x8xf32>
    %cst_63 = arith.constant dense<0.000000e+00> : vector<16x8xf32>
    %86 = tpu.matmul %2, %85, %cst_63 {dimension_numbers = #tpu.dot_dimension_numbers<[1], [0], [0], [1], [0, 0, 1, 1], [], []>} : vector<16x1xf32>, vector<1x8xf32>, vector<16x8xf32> -> vector<16x8xf32>
    %87 = arith.mulf %76, %86 : vector<16x8xf32>
    %88 = vector.broadcast %68 : vector<1x8xf32> to vector<16x8xf32>
    %89 = arith.mulf %87, %88 : vector<16x8xf32>
    %90 = vector.broadcast %69 : vector<1x8xf32> to vector<16x8xf32>
    %91 = arith.addf %89, %90 : vector<16x8xf32>
    %92 = arith.negf %91 : vector<16x8xf32>
    %93 = math.exp %92 : vector<16x8xf32>
    %cst_64 = arith.constant 1.000000e+00 : f32
    %94 = vector.broadcast %cst_64 : f32 to vector<16x8xf32>
    %95 = arith.addf %94, %93 : vector<16x8xf32>
    %96 = arith.divf %94, %95 : vector<16x8xf32>
    %97 = arith.mulf %91, %96 : vector<16x8xf32>
    %c0_65 = arith.constant 0 : index
    %c0_66 = arith.constant 0 : index
    %98 = vector.load %arg11[%c0_65, %c0_66] : memref<4x8xf32, #tpu.memory_space<vmem>>, vector<4x8xf32>
    %cst_67 = arith.constant dense<0.000000e+00> : vector<16x8xf32>
    %99 = tpu.matmul %0, %98, %cst_67 {dimension_numbers = #tpu.dot_dimension_numbers<[1], [0], [0], [1], [0, 0, 1, 1], [], []>} : vector<16x4xf32>, vector<4x8xf32>, vector<16x8xf32> -> vector<16x8xf32>
    %100 = arith.addf %97, %99 : vector<16x8xf32>
    %c0_68 = arith.constant 0 : index
    %c0_69 = arith.constant 0 : index
    %101 = vector.load %arg12[%c0_68, %c0_69] : memref<1x8xf32, #tpu.memory_space<vmem>>, vector<1x8xf32>
    %102 = vector.broadcast %101 : vector<1x8xf32> to vector<16x8xf32>
    %103 = arith.addf %100, %102 : vector<16x8xf32>
    %c0_70 = arith.constant 0 : index
    %c0_71 = arith.constant 0 : index
    %104 = vector.load %arg21[%c0_70, %c0_71] : memref<16x8xf32, #tpu.memory_space<vmem>>, vector<16x8xf32>
    tpu.vector_store %arg21[%c0_70, %c0_71], %103 {strides = array<i32>} : memref<16x8xf32, #tpu.memory_space<vmem>>, vector<16x8xf32>,
    return
  }
  func.func @transform_0(%arg0: i32) -> (i32, i32) {
    %c0_i32 = arith.constant 0 : i32
    %c0_i32_0 = arith.constant 0 : i32
    return %arg0, %c0_i32 : i32, i32
  }
  func.func @transform_1(%arg0: i32) -> (i32, i32) {
    %c0_i32 = arith.constant 0 : i32
    %c0_i32_0 = arith.constant 0 : i32
    %c0_i32_1 = arith.constant 0 : i32
    return %c0_i32, %c0_i32_0 : i32, i32
  }
  func.func @transform_2(%arg0: i32) -> (i32, i32) {
    %c0_i32 = arith.constant 0 : i32
    %c0_i32_0 = arith.constant 0 : i32
    %c0_i32_1 = arith.constant 0 : i32
    return %c0_i32, %c0_i32_0 : i32, i32
  }
  func.func @transform_3(%arg0: i32) -> (i32, i32) {
    %c0_i32 = arith.constant 0 : i32
    %c0_i32_0 = arith.constant 0 : i32
    %c0_i32_1 = arith.constant 0 : i32
    return %c0_i32, %c0_i32_0 : i32, i32
  }
  func.func @transform_4(%arg0: i32) -> (i32, i32) {
    %c0_i32 = arith.constant 0 : i32
    %c0_i32_0 = arith.constant 0 : i32
    %c0_i32_1 = arith.constant 0 : i32
    return %c0_i32, %c0_i32_0 : i32, i32
  }
  func.func @transform_5(%arg0: i32) -> (i32, i32) {
    %c0_i32 = arith.constant 0 : i32
    %c0_i32_0 = arith.constant 0 : i32
    %c0_i32_1 = arith.constant 0 : i32
    return %c0_i32, %c0_i32_0 : i32, i32
  }
  func.func @transform_6(%arg0: i32) -> (i32, i32) {
    %c0_i32 = arith.constant 0 : i32
    %c0_i32_0 = arith.constant 0 : i32
    %c0_i32_1 = arith.constant 0 : i32
    return %c0_i32, %c0_i32_0 : i32, i32
  }
  func.func @transform_7(%arg0: i32) -> (i32, i32) {
    %c0_i32 = arith.constant 0 : i32
    %c0_i32_0 = arith.constant 0 : i32
    %c0_i32_1 = arith.constant 0 : i32
    return %c0_i32, %c0_i32_0 : i32, i32
  }
  func.func @transform_8(%arg0: i32) -> (i32, i32) {
    %c0_i32 = arith.constant 0 : i32
    %c0_i32_0 = arith.constant 0 : i32
    %c0_i32_1 = arith.constant 0 : i32
    return %c0_i32, %c0_i32_0 : i32, i32
  }
  func.func @transform_9(%arg0: i32) -> (i32, i32) {
    %c0_i32 = arith.constant 0 : i32
    %c0_i32_0 = arith.constant 0 : i32
    %c0_i32_1 = arith.constant 0 : i32
    return %c0_i32, %c0_i32_0 : i32, i32
  }
  func.func @transform_10(%arg0: i32) -> (i32, i32) {
    %c0_i32 = arith.constant 0 : i32
    %c0_i32_0 = arith.constant 0 : i32
    %c0_i32_1 = arith.constant 0 : i32
    return %c0_i32, %c0_i32_0 : i32, i32
  }
  func.func @transform_11(%arg0: i32) -> (i32, i32) {
    %c0_i32 = arith.constant 0 : i32
    %c0_i32_0 = arith.constant 0 : i32
    %c0_i32_1 = arith.constant 0 : i32
    return %c0_i32, %c0_i32_0 : i32, i32
  }
  func.func @transform_12(%arg0: i32) -> (i32, i32) {
    %c0_i32 = arith.constant 0 : i32
    %c0_i32_0 = arith.constant 0 : i32
    %c0_i32_1 = arith.constant 0 : i32
    return %c0_i32, %c0_i32_0 : i32, i32
  }
  func.func @transform_13(%arg0: i32) -> (i32, i32) {
    %c0_i32 = arith.constant 0 : i32
    %c0_i32_0 = arith.constant 0 : i32
    %c0_i32_1 = arith.constant 0 : i32
    return %c0_i32, %c0_i32_0 : i32, i32
  }
  func.func @transform_14(%arg0: i32) -> (i32, i32) {
    %c0_i32 = arith.constant 0 : i32
    %c0_i32_0 = arith.constant 0 : i32
    %c0_i32_1 = arith.constant 0 : i32
    return %c0_i32, %c0_i32_0 : i32, i32
  }
  func.func @transform_15(%arg0: i32) -> (i32, i32) {
    %c0_i32 = arith.constant 0 : i32
    %c0_i32_0 = arith.constant 0 : i32
    %c0_i32_1 = arith.constant 0 : i32
    return %c0_i32, %c0_i32_0 : i32, i32
  }
  func.func @transform_16(%arg0: i32) -> (i32, i32) {
    %c0_i32 = arith.constant 0 : i32
    %c0_i32_0 = arith.constant 0 : i32
    %c0_i32_1 = arith.constant 0 : i32
    return %c0_i32, %c0_i32_0 : i32, i32
  }
  func.func @transform_17(%arg0: i32) -> (i32, i32) {
    %c0_i32 = arith.constant 0 : i32
    %c0_i32_0 = arith.constant 0 : i32
    %c0_i32_1 = arith.constant 0 : i32
    return %c0_i32, %c0_i32_0 : i32, i32
  }
  func.func @transform_18(%arg0: i32) -> (i32, i32) {
    %c0_i32 = arith.constant 0 : i32
    %c0_i32_0 = arith.constant 0 : i32
    %c0_i32_1 = arith.constant 0 : i32
    return %c0_i32, %c0_i32_0 : i32, i32
  }
  func.func @transform_19(%arg0: i32) -> (i32, i32) {
    %c0_i32 = arith.constant 0 : i32
    %c0_i32_0 = arith.constant 0 : i32
    %c0_i32_1 = arith.constant 0 : i32
    return %c0_i32, %c0_i32_0 : i32, i32
  }
  func.func @transform_20(%arg0: i32) -> (i32, i32) {
    %c0_i32 = arith.constant 0 : i32
    %c0_i32_0 = arith.constant 0 : i32
    return %arg0, %c0_i32 : i32, i32
  }
}

</mosaic_0001>

<llo_original>
// kernel: tpu_custom_call.1
$region0: #{tpu_custom_call.1}
  #allocation0 [shape = 'u32[]', space=smem, size = 0x4, offset = 0x4, fixed_abs, tag = 'smem constant byte address 0x4 - core index']
  #allocation1 [shape = 'u32[144,128]{1,0:T(1,128)}', space=vmem, size = 0x12000, scoped, tag = 'internal scratch']
  %s0 = inlined_call_operand.vmem [shape: f32[32,4], index: 0, kind: input, shape index: {}]
  %s1 = inlined_call_operand.vmem [shape: f32[2,32], index: 1, kind: input, shape index: {}]
  %s2 = inlined_call_operand.vmem [shape: f32[4,8], index: 2, kind: input, shape index: {}]
  %s3 = inlined_call_operand.vmem [shape: f32[1,8], index: 3, kind: input, shape index: {}]
  %s4 = inlined_call_operand.vmem [shape: f32[1,8], index: 4, kind: input, shape index: {}]
  %s5 = inlined_call_operand.vmem [shape: f32[1,8], index: 5, kind: input, shape index: {}]
  %s6 = inlined_call_operand.vmem [shape: f32[8,8], index: 6, kind: input, shape index: {}]
  %s7 = inlined_call_operand.vmem [shape: f32[1,8], index: 7, kind: input, shape index: {}]
  %s8 = inlined_call_operand.vmem [shape: f32[1,8], index: 8, kind: input, shape index: {}]
  %s9 = inlined_call_operand.vmem [shape: f32[1,8], index: 9, kind: input, shape index: {}]
  %s10 = inlined_call_operand.vmem [shape: f32[4,8], index: 10, kind: input, shape index: {}]
  %s11 = inlined_call_operand.vmem [shape: f32[1,8], index: 11, kind: input, shape index: {}]
  %s12 = inlined_call_operand.vmem [shape: f32[32,8], index: 12, kind: input, shape index: {}]
  %s13 = inlined_call_operand.vmem [shape: f32[1,8], index: 13, kind: input, shape index: {}]
  %s14 = inlined_call_operand.vmem [shape: f32[32,8], index: 14, kind: input, shape index: {}]
  %s15 = inlined_call_operand.vmem [shape: f32[1,8], index: 15, kind: input, shape index: {}]
  %s16 = inlined_call_operand.vmem [shape: f32[8,8], index: 16, kind: input, shape index: {}]
  %s17 = inlined_call_operand.vmem [shape: f32[8,8], index: 17, kind: input, shape index: {}]
  %s18 = inlined_call_operand.vmem [shape: f32[1,16], index: 18, kind: input, shape index: {}]
  %s19 = inlined_call_operand.vmem [shape: f32[16,1], index: 19, kind: input, shape index: {}]
  %s20 = inlined_call_operand.vmem [shape: f32[32,8], index: 20, kind: output, shape index: {}]
  %s21 = sld [smem:[#allocation0]]
  $region113: #{tpu_custom_call.1} parent=0
    _
  %s23 = ssub.s32 1, %s21
  %s24 = scalar_select 0, %s23, %s21
  loop: start=0, step=1, limit=4
  $region2: #{tpu_custom_call.1} parent=0 // loop_pre_header
    _
  $region3: #{tpu_custom_call.1} parent=0 // loop_header
    %s26 = sphi 0, %s30
    %p27 = scmp.ge.s32.totalorder %s26, 4
    %s36 = sphi 0, %s38
    %s39 = sphi 0, %s36
    %s40 = sphi 0, %s39
    %s56 = sphi 0, %s40
    %s60 = sphi 0, %s60
    %s62 = sphi 0, %s60
    %s63 = sphi 0, %s62
    %s77 = sphi 0, %s63
    %s81 = sphi 0, %s81
    %s83 = sphi 0, %s81
    %s84 = sphi 0, %s83
    %s98 = sphi 0, %s84
    %s102 = sphi 0, %s102
    %s104 = sphi 0, %s102
    %s105 = sphi 0, %s104
    %s119 = sphi 0, %s105
    %s123 = sphi 0, %s123
    %s125 = sphi 0, %s123
    %s126 = sphi 0, %s125
    %s140 = sphi 0, %s126
    %s144 = sphi 0, %s144
    %s146 = sphi 0, %s144
    %s147 = sphi 0, %s146
    %s161 = sphi 0, %s147
    %s165 = sphi 0, %s165
    %s167 = sphi 0, %s165
    %s168 = sphi 0, %s167
    %s182 = sphi 0, %s168
    %s186 = sphi 0, %s186
    %s188 = sphi 0, %s186
    %s189 = sphi 0, %s188
    %s203 = sphi 0, %s189
    %s207 = sphi 0, %s207
    %s209 = sphi 0, %s207
    %s210 = sphi 0, %s209
    %s224 = sphi 0, %s210
    %s228 = sphi 0, %s228
    %s230 = sphi 0, %s228
    %s231 = sphi 0, %s230
    %s245 = sphi 0, %s231
    %s249 = sphi 0, %s249
    %s251 = sphi 0, %s249
    %s252 = sphi 0, %s251
    %s266 = sphi 0, %s252
    %s270 = sphi 0, %s270
    %s272 = sphi 0, %s270
    %s273 = sphi 0, %s272
    %s287 = sphi 0, %s273
    %s291 = sphi 0, %s291
    %s293 = sphi 0, %s291
    %s294 = sphi 0, %s293
    %s308 = sphi 0, %s294
    %s312 = sphi 0, %s312
    %s314 = sphi 0, %s312
    %s315 = sphi 0, %s314
    %s329 = sphi 0, %s315
    %s333 = sphi 0, %s333
    %s335 = sphi 0, %s333
    %s336 = sphi 0, %s335
    %s350 = sphi 0, %s336
    %s354 = sphi 0, %s354
    %s356 = sphi 0, %s354
    %s357 = sphi 0, %s356
    %s371 = sphi 0, %s357
    %s375 = sphi 0, %s375
    %s377 = sphi 0, %s375
    %s378 = sphi 0, %s377
    %s392 = sphi 0, %s378
    %s396 = sphi 0, %s396
    %s398 = sphi 0, %s396
    %s399 = sphi 0, %s398
    %s413 = sphi 0, %s399
    %s417 = sphi 0, %s417
    %s419 = sphi 0, %s417
    %s420 = sphi 0, %s419
    %s434 = sphi 0, %s420
    %s438 = sphi 0, %s438
    %s440 = sphi 0, %s438
    %s441 = sphi 0, %s440
    %s455 = sphi 0, %s441
    %s461 = sphi 0, %s463
    %s464 = sphi 0, %s461
    %s465 = sphi 0, %s464
    %s481 = sphi 0, %s465
  $region4: #{tpu_custom_call.1} parent=0 // loop_header_branch
    %29 = sbr.rel (%p27) target = $region8
  $region5: #{tpu_custom_call.1} parent=0 // loop_body
    %s31 = ssub.s32 %s26, 1
    %s32 = ssub.s32 %s26, 2
    %s33 = sadd.s32 %s26, 1
    %s34 = ssub.s32 %s26, %s33
    %p35 = scmp.eq.s32.totalorder %s34, 0
    %s37 = sadd.s32 %s36, 1
    %s38 = scalar_select %p35, %s36, %s37
    %p41 = pneg %p35
    %p42 = scmp.eq.s32.totalorder %s26, 1
    %p43 = por %p41, %p42
    %p44 = scmp.ne.s32.totalorder %s36, %s39
    %p45 = scmp.eq.s32.totalorder %s26, 0
    %p46 = por %p44, %p45
    %p47 = scmp.ne.s32.totalorder %s36, %s39
    %p48 = scmp.eq.s32.totalorder %s31, 1
    %p49 = por %p47, %p48
    %p50 = scmp.ne.s32.totalorder %s39, %s40
    %p51 = scmp.eq.s32.totalorder %s31, 0
    %p52 = por %p50, %p51
    %p53 = scmp.ne.s32.totalorder %s39, %s40
    %p54 = scmp.eq.s32.totalorder %s32, 1
    %p55 = por %p53, %p54
    %p57 = scmp.ne.s32.totalorder %s40, %s56
    %p58 = scmp.eq.s32.totalorder %s32, 0
    %p59 = por %p57, %p58
    %s61 = sadd.s32 %s60, 1
    %p64 = scmp.eq.s32.totalorder %s26, 1
    %p65 = scmp.ne.s32.totalorder %s60, %s62
    %p66 = scmp.eq.s32.totalorder %s26, 0
    %p67 = por %p65, %p66
    %p68 = scmp.ne.s32.totalorder %s60, %s62
    %p69 = scmp.eq.s32.totalorder %s31, 1
    %p70 = por %p68, %p69
    %p71 = scmp.ne.s32.totalorder %s62, %s63
    %p72 = scmp.eq.s32.totalorder %s31, 0
    %p73 = por %p71, %p72
    %p74 = scmp.ne.s32.totalorder %s62, %s63
    %p75 = scmp.eq.s32.totalorder %s32, 1
    %p76 = por %p74, %p75
    %p78 = scmp.ne.s32.totalorder %s63, %s77
    %p79 = scmp.eq.s32.totalorder %s32, 0
    %p80 = por %p78, %p79
    %s82 = sadd.s32 %s81, 1
    %p85 = scmp.eq.s32.totalorder %s26, 1
    %p86 = scmp.ne.s32.totalorder %s81, %s83
    %p87 = scmp.eq.s32.totalorder %s26, 0
    %p88 = por %p86, %p87
    %p89 = scmp.ne.s32.totalorder %s81, %s83
    %p90 = scmp.eq.s32.totalorder %s31, 1
    %p91 = por %p89, %p90
    %p92 = scmp.ne.s32.totalorder %s83, %s84
    %p93 = scmp.eq.s32.totalorder %s31, 0
    %p94 = por %p92, %p93
    %p95 = scmp.ne.s32.totalorder %s83, %s84
    %p96 = scmp.eq.s32.totalorder %s32, 1
    %p97 = por %p95, %p96
    %p99 = scmp.ne.s32.totalorder %s84, %s98
    %p100 = scmp.eq.s32.totalorder %s32, 0
    %p101 = por %p99, %p100
    %s103 = sadd.s32 %s102, 1
    %p106 = scmp.eq.s32.totalorder %s26, 1
    %p107 = scmp.ne.s32.totalorder %s102, %s104
    %p108 = scmp.eq.s32.totalorder %s26, 0
    %p109 = por %p107, %p108
    %p110 = scmp.ne.s32.totalorder %s102, %s104
    %p111 = scmp.eq.s32.totalorder %s31, 1
    %p112 = por %p110, %p111
    %p113 = scmp.ne.s32.totalorder %s104, %s105
    %p114 = scmp.eq.s32.totalorder %s31, 0
    %p115 = por %p113, %p114
    %p116 = scmp.ne.s32.totalorder %s104, %s105
    %p117 = scmp.eq.s32.totalorder %s32, 1
    %p118 = por %p116, %p117
    %p120 = scmp.ne.s32.totalorder %s105, %s119
    %p121 = scmp.eq.s32.totalorder %s32, 0
    %p122 = por %p120, %p121
    %s124 = sadd.s32 %s123, 1
    %p127 = scmp.eq.s32.totalorder %s26, 1
    %p128 = scmp.ne.s32.totalorder %s123, %s125
    %p129 = scmp.eq.s32.totalorder %s26, 0
    %p130 = por %p128, %p129
    %p131 = scmp.ne.s32.totalorder %s123, %s125
    %p132 = scmp.eq.s32.totalorder %s31, 1
    %p133 = por %p131, %p132
    %p134 = scmp.ne.s32.totalorder %s125, %s126
    %p135 = scmp.eq.s32.totalorder %s31, 0
    %p136 = por %p134, %p135
    %p137 = scmp.ne.s32.totalorder %s125, %s126
    %p138 = scmp.eq.s32.totalorder %s32, 1
    %p139 = por %p137, %p138
    %p141 = scmp.ne.s32.totalorder %s126, %s140
    %p142 = scmp.eq.s32.totalorder %s32, 0
    %p143 = por %p141, %p142
    %s145 = sadd.s32 %s144, 1
    %p148 = scmp.eq.s32.totalorder %s26, 1
    %p149 = scmp.ne.s32.totalorder %s144, %s146
    %p150 = scmp.eq.s32.totalorder %s26, 0
    %p151 = por %p149, %p150
    %p152 = scmp.ne.s32.totalorder %s144, %s146
    %p153 = scmp.eq.s32.totalorder %s31, 1
    %p154 = por %p152, %p153
    %p155 = scmp.ne.s32.totalorder %s146, %s147
    %p156 = scmp.eq.s32.totalorder %s31, 0
    %p157 = por %p155, %p156
    %p158 = scmp.ne.s32.totalorder %s146, %s147
    %p159 = scmp.eq.s32.totalorder %s32, 1
    %p160 = por %p158, %p159
    %p162 = scmp.ne.s32.totalorder %s147, %s161
    %p163 = scmp.eq.s32.totalorder %s32, 0
    %p164 = por %p162, %p163
    %s166 = sadd.s32 %s165, 1
    %p169 = scmp.eq.s32.totalorder %s26, 1
    %p170 = scmp.ne.s32.totalorder %s165, %s167
    %p171 = scmp.eq.s32.totalorder %s26, 0
    %p172 = por %p170, %p171
    %p173 = scmp.ne.s32.totalorder %s165, %s167
    %p174 = scmp.eq.s32.totalorder %s31, 1
    %p175 = por %p173, %p174
    %p176 = scmp.ne.s32.totalorder %s167, %s168
    %p177 = scmp.eq.s32.totalorder %s31, 0
    %p178 = por %p176, %p177
    %p179 = scmp.ne.s32.totalorder %s167, %s168
    %p180 = scmp.eq.s32.totalorder %s32, 1
    %p181 = por %p179, %p180
    %p183 = scmp.ne.s32.totalorder %s168, %s182
    %p184 = scmp.eq.s32.totalorder %s32, 0
    %p185 = por %p183, %p184
    %s187 = sadd.s32 %s186, 1
    %p190 = scmp.eq.s32.totalorder %s26, 1
    %p191 = scmp.ne.s32.totalorder %s186, %s188
    %p192 = scmp.eq.s32.totalorder %s26, 0
    %p193 = por %p191, %p192
    %p194 = scmp.ne.s32.totalorder %s186, %s188
    %p195 = scmp.eq.s32.totalorder %s31, 1
    %p196 = por %p194, %p195
    %p197 = scmp.ne.s32.totalorder %s188, %s189
    %p198 = scmp.eq.s32.totalorder %s31, 0
    %p199 = por %p197, %p198
    %p200 = scmp.ne.s32.totalorder %s188, %s189
    %p201 = scmp.eq.s32.totalorder %s32, 1
    %p202 = por %p200, %p201
    %p204 = scmp.ne.s32.totalorder %s189, %s203
    %p205 = scmp.eq.s32.totalorder %s32, 0
    %p206 = por %p204, %p205
    %s208 = sadd.s32 %s207, 1
    %p211 = scmp.eq.s32.totalorder %s26, 1
    %p212 = scmp.ne.s32.totalorder %s207, %s209
    %p213 = scmp.eq.s32.totalorder %s26, 0
    %p214 = por %p212, %p213
    %p215 = scmp.ne.s32.totalorder %s207, %s209
    %p216 = scmp.eq.s32.totalorder %s31, 1
    %p217 = por %p215, %p216
    %p218 = scmp.ne.s32.totalorder %s209, %s210
    %p219 = scmp.eq.s32.totalorder %s31, 0
    %p220 = por %p218, %p219
    %p221 = scmp.ne.s32.totalorder %s209, %s210
    %p222 = scmp.eq.s32.totalorder %s32, 1
    %p223 = por %p221, %p222
    %p225 = scmp.ne.s32.totalorder %s210, %s224
    %p226 = scmp.eq.s32.totalorder %s32, 0
    %p227 = por %p225, %p226
    %s229 = sadd.s32 %s228, 1
    %p232 = scmp.eq.s32.totalorder %s26, 1
    %p233 = scmp.ne.s32.totalorder %s228, %s230
    %p234 = scmp.eq.s32.totalorder %s26, 0
    %p235 = por %p233, %p234
    %p236 = scmp.ne.s32.totalorder %s228, %s230
    %p237 = scmp.eq.s32.totalorder %s31, 1
    %p238 = por %p236, %p237
    %p239 = scmp.ne.s32.totalorder %s230, %s231
    %p240 = scmp.eq.s32.totalorder %s31, 0
    %p241 = por %p239, %p240
    %p242 = scmp.ne.s32.totalorder %s230, %s231
    %p243 = scmp.eq.s32.totalorder %s32, 1
    %p244 = por %p242, %p243
    %p246 = scmp.ne.s32.totalorder %s231, %s245
    %p247 = scmp.eq.s32.totalorder %s32, 0
    %p248 = por %p246, %p247
    %s250 = sadd.s32 %s249, 1
    %p253 = scmp.eq.s32.totalorder %s26, 1
    %p254 = scmp.ne.s32.totalorder %s249, %s251
    %p255 = scmp.eq.s32.totalorder %s26, 0
    %p256 = por %p254, %p255
    %p257 = scmp.ne.s32.totalorder %s249, %s251
    %p258 = scmp.eq.s32.totalorder %s31, 1
    %p259 = por %p257, %p258
    %p260 = scmp.ne.s32.totalorder %s251, %s252
    %p261 = scmp.eq.s32.totalorder %s31, 0
    %p262 = por %p260, %p261
    %p263 = scmp.ne.s32.totalorder %s251, %s252
    %p264 = scmp.eq.s32.totalorder %s32, 1
    %p265 = por %p263, %p264
    %p267 = scmp.ne.s32.totalorder %s252, %s266
    %p268 = scmp.eq.s32.totalorder %s32, 0
    %p269 = por %p267, %p268
    %s271 = sadd.s32 %s270, 1
    %p274 = scmp.eq.s32.totalorder %s26, 1
    %p275 = scmp.ne.s32.totalorder %s270, %s272
    %p276 = scmp.eq.s32.totalorder %s26, 0
    %p277 = por %p275, %p276
    %p278 = scmp.ne.s32.totalorder %s270, %s272
    %p279 = scmp.eq.s32.totalorder %s31, 1
    %p280 = por %p278, %p279
    %p281 = scmp.ne.s32.totalorder %s272, %s273
    %p282 = scmp.eq.s32.totalorder %s31, 0
    %p283 = por %p281, %p282
    %p284 = scmp.ne.s32.totalorder %s272, %s273
    %p285 = scmp.eq.s32.totalorder %s32, 1
    %p286 = por %p284, %p285
    %p288 = scmp.ne.s32.totalorder %s273, %s287
    %p289 = scmp.eq.s32.totalorder %s32, 0
    %p290 = por %p288, %p289
    %s292 = sadd.s32 %s291, 1
    %p295 = scmp.eq.s32.totalorder %s26, 1
    %p296 = scmp.ne.s32.totalorder %s291, %s293
    %p297 = scmp.eq.s32.totalorder %s26, 0
    %p298 = por %p296, %p297
    %p299 = scmp.ne.s32.totalorder %s291, %s293
    %p300 = scmp.eq.s32.totalorder %s31, 1
    %p301 = por %p299, %p300
    %p302 = scmp.ne.s32.totalorder %s293, %s294
    %p303 = scmp.eq.s32.totalorder %s31, 0
    %p304 = por %p302, %p303
    %p305 = scmp.ne.s32.totalorder %s293, %s294
    %p306 = scmp.eq.s32.totalorder %s32, 1
    %p307 = por %p305, %p306
    %p309 = scmp.ne.s32.totalorder %s294, %s308
    %p310 = scmp.eq.s32.totalorder %s32, 0
    %p311 = por %p309, %p310
    %s313 = sadd.s32 %s312, 1
    %p316 = scmp.eq.s32.totalorder %s26, 1
    %p317 = scmp.ne.s32.totalorder %s312, %s314
    %p318 = scmp.eq.s32.totalorder %s26, 0
    %p319 = por %p317, %p318
    %p320 = scmp.ne.s32.totalorder %s312, %s314
    %p321 = scmp.eq.s32.totalorder %s31, 1
    %p322 = por %p320, %p321
    %p323 = scmp.ne.s32.totalorder %s314, %s315
    %p324 = scmp.eq.s32.totalorder %s31, 0
    %p325 = por %p323, %p324
    %p326 = scmp.ne.s32.totalorder %s314, %s315
    %p327 = scmp.eq.s32.totalorder %s32, 1
    %p328 = por %p326, %p327
    %p330 = scmp.ne.s32.totalorder %s315, %s329
    %p331 = scmp.eq.s32.totalorder %s32, 0
    %p332 = por %p330, %p331
    %s334 = sadd.s32 %s333, 1
    %p337 = scmp.eq.s32.totalorder %s26, 1
    %p338 = scmp.ne.s32.totalorder %s333, %s335
    %p339 = scmp.eq.s32.totalorder %s26, 0
    %p340 = por %p338, %p339
    %p341 = scmp.ne.s32.totalorder %s333, %s335
    %p342 = scmp.eq.s32.totalorder %s31, 1
    %p343 = por %p341, %p342
    %p344 = scmp.ne.s32.totalorder %s335, %s336
    %p345 = scmp.eq.s32.totalorder %s31, 0
    %p346 = por %p344, %p345
    %p347 = scmp.ne.s32.totalorder %s335, %s336
    %p348 = scmp.eq.s32.totalorder %s32, 1
    %p349 = por %p347, %p348
    %p351 = scmp.ne.s32.totalorder %s336, %s350
    %p352 = scmp.eq.s32.totalorder %s32, 0
    %p353 = por %p351, %p352
    %s355 = sadd.s32 %s354, 1
    %p358 = scmp.eq.s32.totalorder %s26, 1
    %p359 = scmp.ne.s32.totalorder %s354, %s356
    %p360 = scmp.eq.s32.totalorder %s26, 0
    %p361 = por %p359, %p360
    %p362 = scmp.ne.s32.totalorder %s354, %s356
    %p363 = scmp.eq.s32.totalorder %s31, 1
    %p364 = por %p362, %p363
    %p365 = scmp.ne.s32.totalorder %s356, %s357
    %p366 = scmp.eq.s32.totalorder %s31, 0
    %p367 = por %p365, %p366
    %p368 = scmp.ne.s32.totalorder %s356, %s357
    %p369 = scmp.eq.s32.totalorder %s32, 1
    %p370 = por %p368, %p369
    %p372 = scmp.ne.s32.totalorder %s357, %s371
    %p373 = scmp.eq.s32.totalorder %s32, 0
    %p374 = por %p372, %p373
    %s376 = sadd.s32 %s375, 1
    %p379 = scmp.eq.s32.totalorder %s26, 1
    %p380 = scmp.ne.s32.totalorder %s375, %s377
    %p381 = scmp.eq.s32.totalorder %s26, 0
    %p382 = por %p380, %p381
    %p383 = scmp.ne.s32.totalorder %s375, %s377
    %p384 = scmp.eq.s32.totalorder %s31, 1
    %p385 = por %p383, %p384
    %p386 = scmp.ne.s32.totalorder %s377, %s378
    %p387 = scmp.eq.s32.totalorder %s31, 0
    %p388 = por %p386, %p387
    %p389 = scmp.ne.s32.totalorder %s377, %s378
    %p390 = scmp.eq.s32.totalorder %s32, 1
    %p391 = por %p389, %p390
    %p393 = scmp.ne.s32.totalorder %s378, %s392
    %p394 = scmp.eq.s32.totalorder %s32, 0
    %p395 = por %p393, %p394
    %s397 = sadd.s32 %s396, 1
    %p400 = scmp.eq.s32.totalorder %s26, 1
    %p401 = scmp.ne.s32.totalorder %s396, %s398
    %p402 = scmp.eq.s32.totalorder %s26, 0
    %p403 = por %p401, %p402
    %p404 = scmp.ne.s32.totalorder %s396, %s398
    %p405 = scmp.eq.s32.totalorder %s31, 1
    %p406 = por %p404, %p405
    %p407 = scmp.ne.s32.totalorder %s398, %s399
    %p408 = scmp.eq.s32.totalorder %s31, 0
    %p409 = por %p407, %p408
    %p410 = scmp.ne.s32.totalorder %s398, %s399
    %p411 = scmp.eq.s32.totalorder %s32, 1
    %p412 = por %p410, %p411
    %p414 = scmp.ne.s32.totalorder %s399, %s413
    %p415 = scmp.eq.s32.totalorder %s32, 0
    %p416 = por %p414, %p415
    %s418 = sadd.s32 %s417, 1
    %p421 = scmp.eq.s32.totalorder %s26, 1
    %p422 = scmp.ne.s32.totalorder %s417, %s419
    %p423 = scmp.eq.s32.totalorder %s26, 0
    %p424 = por %p422, %p423
    %p425 = scmp.ne.s32.totalorder %s417, %s419
    %p426 = scmp.eq.s32.totalorder %s31, 1
    %p427 = por %p425, %p426
    %p428 = scmp.ne.s32.totalorder %s419, %s420
    %p429 = scmp.eq.s32.totalorder %s31, 0
    %p430 = por %p428, %p429
    %p431 = scmp.ne.s32.totalorder %s419, %s420
    %p432 = scmp.eq.s32.totalorder %s32, 1
    %p433 = por %p431, %p432
    %p435 = scmp.ne.s32.totalorder %s420, %s434
    %p436 = scmp.eq.s32.totalorder %s32, 0
    %p437 = por %p435, %p436
    %s439 = sadd.s32 %s438, 1
    %p442 = scmp.eq.s32.totalorder %s26, 1
    %p443 = scmp.ne.s32.totalorder %s438, %s440
    %p444 = scmp.eq.s32.totalorder %s26, 0
    %p445 = por %p443, %p444
    %p446 = scmp.ne.s32.totalorder %s438, %s440
    %p447 = scmp.eq.s32.totalorder %s31, 1
    %p448 = por %p446, %p447
    %p449 = scmp.ne.s32.totalorder %s440, %s441
    %p450 = scmp.eq.s32.totalorder %s31, 0
    %p451 = por %p449, %p450
    %p452 = scmp.ne.s32.totalorder %s440, %s441
    %p453 = scmp.eq.s32.totalorder %s32, 1
    %p454 = por %p452, %p453
    %p456 = scmp.ne.s32.totalorder %s441, %s455
    %p457 = scmp.eq.s32.totalorder %s32, 0
    %p458 = por %p456, %p457
    %s459 = ssub.s32 %s26, %s33
    %p460 = scmp.eq.s32.totalorder %s459, 0
    %s462 = sadd.s32 %s461, 1
    %s463 = scalar_select %p460, %s461, %s462
    %p466 = pneg %p460
    %p467 = scmp.eq.s32.totalorder %s26, 1
    %p468 = por %p466, %p467
    %p469 = scmp.ne.s32.totalorder %s461, %s464
    %p470 = scmp.eq.s32.totalorder %s26, 0
    %p471 = por %p469, %p470
    %p472 = scmp.ne.s32.totalorder %s461, %s464
    %p473 = scmp.eq.s32.totalorder %s31, 1
    %p474 = por %p472, %p473
    %p475 = scmp.ne.s32.totalorder %s464, %s465
    %p476 = scmp.eq.s32.totalorder %s31, 0
    %p477 = por %p475, %p476
    %p478 = scmp.ne.s32.totalorder %s464, %s465
    %p479 = scmp.eq.s32.totalorder %s32, 1
    %p480 = por %p478, %p479
    %p482 = scmp.ne.s32.totalorder %s465, %s481
    %p483 = scmp.eq.s32.totalorder %s32, 0
    %p484 = por %p482, %p483
    %p485 = scmp.le.s32.totalorder 1, %s26
    %p486 = scmp.lt.s32.totalorder %s26, 3
    %p487 = pnand %p485, %p486
    %p488 = pneg %p487
    // Predicated region
    $region9: #{tpu_custom_call.1} parent=5 // pred_check
      _
    $region10: #{tpu_custom_call.1} parent=5 // pred_check_branch
      %490 = sbr.rel (%p487) target = $region12
    $region11: #{tpu_custom_call.1} parent=5 // pred_region
      %s491 = ssub.s32 %s26, 1
      // Predicated region
      $region13: #{tpu_custom_call.1} parent=11 // pred_check
        %p492 = pneg %p73
      $region14: #{tpu_custom_call.1} parent=11 // pred_check_branch
        %494 = sbr.rel (%p492) target = $region16
      $region15: #{tpu_custom_call.1} parent=11 // pred_region
        _
      $region16: #{tpu_custom_call.1} parent=11 // pred_fallthru
        _
      // Predicated region
      $region17: #{tpu_custom_call.1} parent=11 // pred_check
        %p495 = pneg %p94
      $region18: #{tpu_custom_call.1} parent=11 // pred_check_branch
        %497 = sbr.rel (%p495) target = $region20
      $region19: #{tpu_custom_call.1} parent=11 // pred_region
        _
      $region20: #{tpu_custom_call.1} parent=11 // pred_fallthru
        _
      // Predicated region
      $region21: #{tpu_custom_call.1} parent=11 // pred_check
        %p498 = pneg %p115
      $region22: #{tpu_custom_call.1} parent=11 // pred_check_branch
        %500 = sbr.rel (%p498) target = $region24
      $region23: #{tpu_custom_call.1} parent=11 // pred_region
        _
      $region24: #{tpu_custom_call.1} parent=11 // pred_fallthru
        _
      // Predicated region
      $region25: #{tpu_custom_call.1} parent=11 // pred_check
        %p501 = pneg %p136
      $region26: #{tpu_custom_call.1} parent=11 // pred_check_branch
        %503 = sbr.rel (%p501) target = $region28
      $region27: #{tpu_custom_call.1} parent=11 // pred_region
        _
      $region28: #{tpu_custom_call.1} parent=11 // pred_fallthru
        _
      // Predicated region
      $region29: #{tpu_custom_call.1} parent=11 // pred_check
        %p504 = pneg %p157
      $region30: #{tpu_custom_call.1} parent=11 // pred_check_branch
        %506 = sbr.rel (%p504) target = $region32
      $region31: #{tpu_custom_call.1} parent=11 // pred_region
        _
      $region32: #{tpu_custom_call.1} parent=11 // pred_fallthru
        _
      // Predicated region
      $region33: #{tpu_custom_call.1} parent=11 // pred_check
        %p507 = pneg %p178
      $region34: #{tpu_custom_call.1} parent=11 // pred_check_branch
        %509 = sbr.rel (%p507) target = $region36
      $region35: #{tpu_custom_call.1} parent=11 // pred_region
        _
      $region36: #{tpu_custom_call.1} parent=11 // pred_fallthru
        _
      // Predicated region
      $region37: #{tpu_custom_call.1} parent=11 // pred_check
        %p510 = pneg %p199
      $region38: #{tpu_custom_call.1} parent=11 // pred_check_branch
        %512 = sbr.rel (%p510) target = $region40
      $region39: #{tpu_custom_call.1} parent=11 // pred_region
        _
      $region40: #{tpu_custom_call.1} parent=11 // pred_fallthru
        _
      // Predicated region
      $region41: #{tpu_custom_call.1} parent=11 // pred_check
        %p513 = pneg %p220
      $region42: #{tpu_custom_call.1} parent=11 // pred_check_branch
        %515 = sbr.rel (%p513) target = $region44
      $region43: #{tpu_custom_call.1} parent=11 // pred_region
        _
      $region44: #{tpu_custom_call.1} parent=11 // pred_fallthru
        _
      // Predicated region
      $region45: #{tpu_custom_call.1} parent=11 // pred_check
        %p516 = pneg %p241
      $region46: #{tpu_custom_call.1} parent=11 // pred_check_branch
        %518 = sbr.rel (%p516) target = $region48
      $region47: #{tpu_custom_call.1} parent=11 // pred_region
        _
      $region48: #{tpu_custom_call.1} parent=11 // pred_fallthru
        _
      // Predicated region
      $region49: #{tpu_custom_call.1} parent=11 // pred_check
        %p519 = pneg %p262
      $region50: #{tpu_custom_call.1} parent=11 // pred_check_branch
        %521 = sbr.rel (%p519) target = $region52
      $region51: #{tpu_custom_call.1} parent=11 // pred_region
        _
      $region52: #{tpu_custom_call.1} parent=11 // pred_fallthru
        _
      // Predicated region
      $region53: #{tpu_custom_call.1} parent=11 // pred_check
        %p522 = pneg %p283
      $region54: #{tpu_custom_call.1} parent=11 // pred_check_branch
        %524 = sbr.rel (%p522) target = $region56
      $region55: #{tpu_custom_call.1} parent=11 // pred_region
        _
      $region56: #{tpu_custom_call.1} parent=11 // pred_fallthru
        _
      // Predicated region
      $region57: #{tpu_custom_call.1} parent=11 // pred_check
        %p525 = pneg %p304
      $region58: #{tpu_custom_call.1} parent=11 // pred_check_branch
        %527 = sbr.rel (%p525) target = $region60
      $region59: #{tpu_custom_call.1} parent=11 // pred_region
        _
      $region60: #{tpu_custom_call.1} parent=11 // pred_fallthru
        _
      // Predicated region
      $region61: #{tpu_custom_call.1} parent=11 // pred_check
        %p528 = pneg %p325
      $region62: #{tpu_custom_call.1} parent=11 // pred_check_branch
        %530 = sbr.rel (%p528) target = $region64
      $region63: #{tpu_custom_call.1} parent=11 // pred_region
        _
      $region64: #{tpu_custom_call.1} parent=11 // pred_fallthru
        _
      // Predicated region
      $region65: #{tpu_custom_call.1} parent=11 // pred_check
        %p531 = pneg %p346
      $region66: #{tpu_custom_call.1} parent=11 // pred_check_branch
        %533 = sbr.rel (%p531) target = $region68
      $region67: #{tpu_custom_call.1} parent=11 // pred_region
        _
      $region68: #{tpu_custom_call.1} parent=11 // pred_fallthru
        _
      // Predicated region
      $region69: #{tpu_custom_call.1} parent=11 // pred_check
        %p534 = pneg %p367
      $region70: #{tpu_custom_call.1} parent=11 // pred_check_branch
        %536 = sbr.rel (%p534) target = $region72
      $region71: #{tpu_custom_call.1} parent=11 // pred_region
        _
      $region72: #{tpu_custom_call.1} parent=11 // pred_fallthru
        _
      // Predicated region
      $region73: #{tpu_custom_call.1} parent=11 // pred_check
        %p537 = pneg %p388
      $region74: #{tpu_custom_call.1} parent=11 // pred_check_branch
        %539 = sbr.rel (%p537) target = $region76
      $region75: #{tpu_custom_call.1} parent=11 // pred_region
        _
      $region76: #{tpu_custom_call.1} parent=11 // pred_fallthru
        _
      // Predicated region
      $region77: #{tpu_custom_call.1} parent=11 // pred_check
        %p540 = pneg %p409
      $region78: #{tpu_custom_call.1} parent=11 // pred_check_branch
        %542 = sbr.rel (%p540) target = $region80
      $region79: #{tpu_custom_call.1} parent=11 // pred_region
        _
      $region80: #{tpu_custom_call.1} parent=11 // pred_fallthru
        _
      // Predicated region
      $region81: #{tpu_custom_call.1} parent=11 // pred_check
        %p543 = pneg %p430
      $region82: #{tpu_custom_call.1} parent=11 // pred_check_branch
        %545 = sbr.rel (%p543) target = $region84
      $region83: #{tpu_custom_call.1} parent=11 // pred_region
        _
      $region84: #{tpu_custom_call.1} parent=11 // pred_fallthru
        _
      // Predicated region
      $region85: #{tpu_custom_call.1} parent=11 // pred_check
        %p546 = pneg %p451
      $region86: #{tpu_custom_call.1} parent=11 // pred_check_branch
        %548 = sbr.rel (%p546) target = $region88
      $region87: #{tpu_custom_call.1} parent=11 // pred_region
        _
      $region88: #{tpu_custom_call.1} parent=11 // pred_fallthru
        _
    $region12: #{tpu_custom_call.1} parent=5 // pred_fallthru
      _
    %p549 = scmp.lt.s32.totalorder %s26, 2
    // Predicated region
    $region89: #{tpu_custom_call.1} parent=5 // pred_check
      %p550 = pneg %p549
    $region90: #{tpu_custom_call.1} parent=5 // pred_check_branch
      %552 = sbr.rel (%p550) target = $region92
    $region91: #{tpu_custom_call.1} parent=5 // pred_region
      // Predicated region
      $region93: #{tpu_custom_call.1} parent=91 // pred_check
        %p553 = pneg %p46
      $region94: #{tpu_custom_call.1} parent=91 // pred_check_branch
        %555 = sbr.rel (%p553) target = $region96
      $region95: #{tpu_custom_call.1} parent=91 // pred_region
        %s556 = smul.u32 2, %s26
        %p557 = scmp.lt.s32.totalorder %s556, 3
        %s558 = scalar_select %p557, %s556, 3
        %s559 = smul.addr %s558, 8
        %s560 = scalar_lea.vmem %s0, %s559
        %s561 = smul.u32 2, %s26
      $region96: #{tpu_custom_call.1} parent=91 // pred_fallthru
        _
    $region92: #{tpu_custom_call.1} parent=5 // pred_fallthru
      _
    %p562 = scmp.le.s32.totalorder 1, %s26
    %p563 = scmp.lt.s32.totalorder %s26, 3
    %p564 = pnand %p562, %p563
    %p565 = pneg %p564
    // Predicated region
    $region97: #{tpu_custom_call.1} parent=5 // pred_check
      _
    $region98: #{tpu_custom_call.1} parent=5 // pred_check_branch
      %567 = sbr.rel (%p564) target = $region100
    $region99: #{tpu_custom_call.1} parent=5 // pred_region
      %s568 = ssub.s32 %s26, 1
      %s569 = smul.u32 2, %s31
      %p570 = scmp.lt.s32.totalorder %s569, 3
      %s571 = scalar_select %p570, %s569, 3
      %s572 = smul.addr %s571, 8
      %s573 = scalar_lea.vmem %s0, %s572
      %p574 = pneg %p52
      %p575 = pneg %p49
      %p576 = pneg %p73
      %p577 = pneg %p70
      %p578 = pneg %p94
      %p579 = pneg %p91
      %p580 = pneg %p115
      %p581 = pneg %p112
      %p582 = pneg %p136
      %p583 = pneg %p133
      %p584 = pneg %p157
      %p585 = pneg %p154
      %p586 = pneg %p178
      %p587 = pneg %p175
      %p588 = pneg %p199
      %p589 = pneg %p196
      %p590 = pneg %p220
      %p591 = pneg %p217
      %p592 = pneg %p241
      %p593 = pneg %p238
      %p594 = pneg %p262
      %p595 = pneg %p259
      %p596 = pneg %p283
      %p597 = pneg %p280
      %p598 = pneg %p304
      %p599 = pneg %p301
      %p600 = pneg %p325
      %p601 = pneg %p322
      %p602 = pneg %p346
      %p603 = pneg %p343
      %p604 = pneg %p367
      %p605 = pneg %p364
      %p606 = pneg %p388
      %p607 = pneg %p385
      %p608 = pneg %p409
      %p609 = pneg %p406
      %p610 = pneg %p430
      %p611 = pneg %p427
      %p612 = pneg %p451
      %p613 = pneg %p448
      %p614 = pneg %p477
      %p615 = pneg %p474
      %s616 = smul.u32 2, %s31
      %p617 = scmp.lt.s32.totalorder %s616, 3
      %s618 = scalar_select %p617, %s616, 3
      %s619 = smul.addr %s618, 8
      %s620 = scalar_lea.vmem %s20, %s619
      %s621 = smul.u32 2, %s31
      %p622 = scmp.lt.s32.totalorder %s621, 3
      %s623 = scalar_select %p622, %s621, 3
      %s624 = smul.addr %s623, 8
      %s625 = scalar_lea.vmem %s0, %s624
      %s626 = smul.u32 2, %s31
      %s627 = smul.u32 2, %s31
      %p628 = scmp.lt.s32.totalorder %s627, 3
      %s629 = scalar_select %p628, %s627, 3
      %s630 = smul.addr %s629, 8
      %s631 = scalar_lea.vmem %s20, %s630
      %s632 = smul.u32 2, %s31
      %v633 = vld [vmem:[%s625] sm:$0xff]
      %v634 = vld [vmem:[%s625 + $0x8] sm:$0xff]
      %v635 = vld [vmem:[%s18] sm:$0x1]
      %v636 = vld [vmem:[%s19] sm:$0xff]
      %v637 = vld [vmem:[%s19 + $0x8] sm:$0xff]
      %v638 = vld [vmem:[%s16] sm:$0xff]
      %v639 = vld [vmem:[%s17] sm:$0xff]
      %s640 = scalar_lea.vmem %s1, %s31
      %v641 = vld [vmem:[%s640] sm:$0x1]
      %v642 = vxor.u32 %v641, 2147483648
      %v643 = vmul.f32 %v642, 1.442695
      %v644 = vpow.pop %v643
      %v645 = vadd.f32 %v644, 1.0
      %v646 = vrcp.pop %v645
      %v647 = vmul.f32 1.0, %v646
      %v648 = vmul.f32 %v641, %v647
      %v649 = vld [vmem:[%s12] sm:$0xff]
      %v650 = vld [vmem:[%s12 + $0x8] sm:$0xff]
      %v651 = vld [vmem:[%s12 + $0x10] sm:$0xff]
      %v652 = vld [vmem:[%s12 + $0x18] sm:$0xff]
      %v653 = vld [vmem:[%s13] sm:$0x1]
      %vm654 = vcmask 261120
      %v656 = vsel %vm654, %v648, 0
      %658 = vmatprep.subr.mxu0 0.0
      %659 = vmatpush1.msra.mxu0 %v649
      %660 = vmatprep.subr.mxu0 0.0
      %661 = vmatpush1.msra.mxu0 %v650
      %662 = vmatprep.subr.mxu0 0.0
      %663 = vmatpush1.msra.mxu0 %v651
      %664 = vmatprep.subr.mxu0 0.0
      %665 = vmatpush1.msra.mxu0 %v652
      %666 = vmatprep.subr.mxu0 0.0
      %667 = vmatpush1.msra.mxu0 0.0
      %668 = vmatprep.subr.mxu0 0.0
      %669 = vmatpush1.msra.mxu0 0.0
      %670 = vmatprep.subr.mxu0 0.0
      %671 = vmatpush1.msra.mxu0 0.0
      %672 = vmatprep.subr.mxu0 0.0
      %673 = vmatpush1.msra.mxu0 0.0
      %674 = vmatprep.subr.mxu0 0.0
      %675 = vmatpush1.msra.mxu0 0.0
      %676 = vmatprep.subr.mxu0 0.0
      %677 = vmatpush1.msra.mxu0 0.0
      %678 = vmatprep.subr.mxu0 0.0
      %679 = vmatpush1.msra.mxu0 0.0
      %680 = vmatprep.subr.mxu0 0.0
      %681 = vmatpush1.msra.mxu0 0.0
      %682 = vmatprep.subr.mxu0 0.0
      %683 = vmatpush1.msra.mxu0 0.0
      %684 = vmatprep.subr.mxu0 0.0
      %685 = vmatpush1.msra.mxu0 0.0
      %686 = vmatprep.subr.mxu0 0.0
      %687 = vmatpush1.msra.mxu0 0.0
      %688 = vmatprep.subr.mxu0 0.0
      %689 = vmatpush1.msra.mxu0 0.0
      %690 = vmatprep.subr.mxu0 0.0
      %691 = vmatpush1.msra.mxu0 0.0
      %692 = vmatprep.subr.mxu0 0.0
      %693 = vmatpush1.msra.mxu0 0.0
      %694 = vmatprep.subr.mxu0 0.0
      %695 = vmatpush1.msra.mxu0 0.0
      %696 = vmatprep.subr.mxu0 0.0
      %697 = vmatpush1.msra.mxu0 0.0
      %698 = vmatprep.subr.mxu0 0.0
      %699 = vmatpush1.msra.mxu0 0.0
      %700 = vmatprep.subr.mxu0 0.0
      %701 = vmatpush1.msra.mxu0 0.0
      %702 = vmatprep.subr.mxu0 0.0
      %703 = vmatpush1.msra.mxu0 0.0
      %704 = vmatprep.subr.mxu0 0.0
      %705 = vmatpush1.msra.mxu0 0.0
      %706 = vmatprep.subr.mxu0 0.0
      %707 = vmatpush1.msra.mxu0 0.0
      %708 = vmatprep.subr.mxu0 0.0
      %709 = vmatpush1.msra.mxu0 0.0
      %710 = vmatprep.subr.mxu0 0.0
      %711 = vmatpush1.msra.mxu0 0.0
      %712 = vmatprep.subr.mxu0 0.0
      %713 = vmatpush1.msra.mxu0 0.0
      %714 = vmatprep.subr.mxu0 0.0
      %715 = vmatpush1.msra.mxu0 0.0
      %716 = vmatprep.subr.mxu0 0.0
      %717 = vmatpush1.msra.mxu0 0.0
      %718 = vmatprep.subr.mxu0 0.0
      %719 = vmatpush1.msra.mxu0 0.0
      %720 = vmatprep.subr.mxu0 0.0
      %721 = vmatpush1.msra.mxu0 0.0
      %722 = vmatprep.mubr.f32.mxu0 0.0
      %723 = vmatmul.mubr.f32.gmra.mrb[0].mxu0 %v656
      %v724 = vpop.f32.mrb[0].mxu0
      %v725 = vadd.f32 %v653, %v724
      %v726 = vpop.f32.mrb[0].mxu0
      %727 = vdwg.mxu0
      %v728 = vld [vmem:[%s14] sm:$0xff]
      %v729 = vld [vmem:[%s14 + $0x8] sm:$0xff]
      %v730 = vld [vmem:[%s14 + $0x10] sm:$0xff]
      %v731 = vld [vmem:[%s14 + $0x18] sm:$0xff]
      %v732 = vld [vmem:[%s15] sm:$0x1]
      %733 = vmatprep.subr.mxu0 0.0
      %734 = vmatpush1.msra.mxu0 %v728
      %735 = vmatprep.subr.mxu0 0.0
      %736 = vmatpush1.msra.mxu0 %v729
      %737 = vmatprep.subr.mxu0 0.0
      %738 = vmatpush1.msra.mxu0 %v730
      %739 = vmatprep.subr.mxu0 0.0
      %740 = vmatpush1.msra.mxu0 %v731
      %741 = vmatprep.subr.mxu0 0.0
      %742 = vmatpush1.msra.mxu0 0.0
      %743 = vmatprep.subr.mxu0 0.0
      %744 = vmatpush1.msra.mxu0 0.0
      %745 = vmatprep.subr.mxu0 0.0
      %746 = vmatpush1.msra.mxu0 0.0
      %747 = vmatprep.subr.mxu0 0.0
      %748 = vmatpush1.msra.mxu0 0.0
      %749 = vmatprep.subr.mxu0 0.0
      %750 = vmatpush1.msra.mxu0 0.0
      %751 = vmatprep.subr.mxu0 0.0
      %752 = vmatpush1.msra.mxu0 0.0
      %753 = vmatprep.subr.mxu0 0.0
      %754 = vmatpush1.msra.mxu0 0.0
      %755 = vmatprep.subr.mxu0 0.0
      %756 = vmatpush1.msra.mxu0 0.0
      %757 = vmatprep.subr.mxu0 0.0
      %758 = vmatpush1.msra.mxu0 0.0
      %759 = vmatprep.subr.mxu0 0.0
      %760 = vmatpush1.msra.mxu0 0.0
      %761 = vmatprep.subr.mxu0 0.0
      %762 = vmatpush1.msra.mxu0 0.0
      %763 = vmatprep.subr.mxu0 0.0
      %764 = vmatpush1.msra.mxu0 0.0
      %765 = vmatprep.subr.mxu0 0.0
      %766 = vmatpush1.msra.mxu0 0.0
      %767 = vmatprep.subr.mxu0 0.0
      %768 = vmatpush1.msra.mxu0 0.0
      %769 = vmatprep.subr.mxu0 0.0
      %770 = vmatpush1.msra.mxu0 0.0
      %771 = vmatprep.subr.mxu0 0.0
      %772 = vmatpush1.msra.mxu0 0.0
      %773 = vmatprep.subr.mxu0 0.0
      %774 = vmatpush1.msra.mxu0 0.0
      %775 = vmatprep.subr.mxu0 0.0
      %776 = vmatpush1.msra.mxu0 0.0
      %777 = vmatprep.subr.mxu0 0.0
      %778 = vmatpush1.msra.mxu0 0.0
      %779 = vmatprep.subr.mxu0 0.0
      %780 = vmatpush1.msra.mxu0 0.0
      %781 = vmatprep.subr.mxu0 0.0
      %782 = vmatpush1.msra.mxu0 0.0
      %783 = vmatprep.subr.mxu0 0.0
      %784 = vmatpush1.msra.mxu0 0.0
      %785 = vmatprep.subr.mxu0 0.0
      %786 = vmatpush1.msra.mxu0 0.0
      %787 = vmatprep.subr.mxu0 0.0
      %788 = vmatpush1.msra.mxu0 0.0
      %789 = vmatprep.subr.mxu0 0.0
      %790 = vmatpush1.msra.mxu0 0.0
      %791 = vmatprep.subr.mxu0 0.0
      %792 = vmatpush1.msra.mxu0 0.0
      %793 = vmatprep.subr.mxu0 0.0
      %794 = vmatpush1.msra.mxu0 0.0
      %795 = vmatprep.subr.mxu0 0.0
      %796 = vmatpush1.msra.mxu0 0.0
      %797 = vmatprep.mubr.f32.mxu0 0.0
      %798 = vmatmul.mubr.f32.gmra.mrb[0].mxu0 %v656
      %v799 = vpop.f32.mrb[0].mxu0
      %v800 = vadd.f32 %v732, %v799
      %v801 = vpop.f32.mrb[0].mxu0
      %802 = vdwg.mxu0
      %vm803 = vcmask 7168
      %v805 = vsel %vm803, %v636, 0
      %v808 = vsel %vm803, %v637, 0
      %vm810 = vcmask 1040384
      %v812 = vsel %vm810, %v800, 0
      %814 = vmatprep.subr.mxu0 0.0
      %815 = vmatpush1.msra.mxu0 %v812
      %816 = vmatprep.subr.mxu0 0.0
      %817 = vmatpush1.msra.mxu0 0.0
      %818 = vmatprep.subr.mxu0 0.0
      %819 = vmatpush1.msra.mxu0 0.0
      %820 = vmatprep.subr.mxu0 0.0
      %821 = vmatpush1.msra.mxu0 0.0
      %822 = vmatprep.subr.mxu0 0.0
      %823 = vmatpush1.msra.mxu0 0.0
      %824 = vmatprep.subr.mxu0 0.0
      %825 = vmatpush1.msra.mxu0 0.0
      %826 = vmatprep.subr.mxu0 0.0
      %827 = vmatpush1.msra.mxu0 0.0
      %828 = vmatprep.subr.mxu0 0.0
      %829 = vmatpush1.msra.mxu0 0.0
      %830 = vmatprep.subr.mxu0 0.0
      %831 = vmatpush1.msra.mxu0 0.0
      %832 = vmatprep.subr.mxu0 0.0
      %833 = vmatpush1.msra.mxu0 0.0
      %834 = vmatprep.subr.mxu0 0.0
      %835 = vmatpush1.msra.mxu0 0.0
      %836 = vmatprep.subr.mxu0 0.0
      %837 = vmatpush1.msra.mxu0 0.0
      %838 = vmatprep.subr.mxu0 0.0
      %839 = vmatpush1.msra.mxu0 0.0
      %840 = vmatprep.subr.mxu0 0.0
      %841 = vmatpush1.msra.mxu0 0.0
      %842 = vmatprep.subr.mxu0 0.0
      %843 = vmatpush1.msra.mxu0 0.0
      %844 = vmatprep.subr.mxu0 0.0
      %845 = vmatpush1.msra.mxu0 0.0
      %846 = vmatprep.subr.mxu0 0.0
      %847 = vmatpush1.msra.mxu0 0.0
      %848 = vmatprep.subr.mxu0 0.0
      %849 = vmatpush1.msra.mxu0 0.0
      %850 = vmatprep.subr.mxu0 0.0
      %851 = vmatpush1.msra.mxu0 0.0
      %852 = vmatprep.subr.mxu0 0.0
      %853 = vmatpush1.msra.mxu0 0.0
      %854 = vmatprep.subr.mxu0 0.0
      %855 = vmatpush1.msra.mxu0 0.0
      %856 = vmatprep.subr.mxu0 0.0
      %857 = vmatpush1.msra.mxu0 0.0
      %858 = vmatprep.subr.mxu0 0.0
      %859 = vmatpush1.msra.mxu0 0.0
      %860 = vmatprep.subr.mxu0 0.0
      %861 = vmatpush1.msra.mxu0 0.0
      %862 = vmatprep.subr.mxu0 0.0
      %863 = vmatpush1.msra.mxu0 0.0
      %864 = vmatprep.subr.mxu0 0.0
      %865 = vmatpush1.msra.mxu0 0.0
      %866 = vmatprep.subr.mxu0 0.0
      %867 = vmatpush1.msra.mxu0 0.0
      %868 = vmatprep.subr.mxu0 0.0
      %869 = vmatpush1.msra.mxu0 0.0
      %870 = vmatprep.subr.mxu0 0.0
      %871 = vmatpush1.msra.mxu0 0.0
      %872 = vmatprep.subr.mxu0 0.0
      %873 = vmatpush1.msra.mxu0 0.0
      %874 = vmatprep.subr.mxu0 0.0
      %875 = vmatpush1.msra.mxu0 0.0
      %876 = vmatprep.subr.mxu0 0.0
      %877 = vmatpush1.msra.mxu0 0.0
      %878 = vmatprep.mubr.f32.mxu0 0.0
      %879 = vmatmul.mubr.f32.gmra.mrb[0].mxu0 %v805
      %v880 = vpop.f32.mrb[0].mxu0
      %v881 = vadd.f32 0.0, %v880
      %v882 = vpop.f32.mrb[0].mxu0
      %883 = vmatprep.mubr.f32.mxu0 0.0
      %884 = vmatmul.mubr.f32.gmra.mrb[0].mxu0 %v808
      %v885 = vpop.f32.mrb[0].mxu0
      %v886 = vadd.f32 0.0, %v885
      %v887 = vpop.f32.mrb[0].mxu0
      %888 = vdwg.mxu0
      %v889 = vld [vmem:[%s2] sm:$0xf]
      %v890 = vld [vmem:[%s3] sm:$0x1]
      %v892 = vlaneseq
      %v893 = vshrl.u32 %v892, 7
      %v894 = vsub.s32 0, %v893
      %v895 = vrot.slane %v890, %v894
      %vm897 = vcmask 31744
      %v899 = vsel %vm897, %v633, 0
      %v902 = vsel %vm897, %v634, 0
      %vm904 = vcmask 1043456
      %v906 = vsel %vm904, %v889, 0
      %908 = vmatprep.subr.mxu0 0.0
      %909 = vmatpush1.msra.mxu0 %v906
      %910 = vmatprep.subr.mxu0 0.0
      %911 = vmatpush1.msra.mxu0 0.0
      %912 = vmatprep.subr.mxu0 0.0
      %913 = vmatpush1.msra.mxu0 0.0
      %914 = vmatprep.subr.mxu0 0.0
      %915 = vmatpush1.msra.mxu0 0.0
      %916 = vmatprep.subr.mxu0 0.0
      %917 = vmatpush1.msra.mxu0 0.0
      %918 = vmatprep.subr.mxu0 0.0
      %919 = vmatpush1.msra.mxu0 0.0
      %920 = vmatprep.subr.mxu0 0.0
      %921 = vmatpush1.msra.mxu0 0.0
      %922 = vmatprep.subr.mxu0 0.0
      %923 = vmatpush1.msra.mxu0 0.0
      %924 = vmatprep.subr.mxu0 0.0
      %925 = vmatpush1.msra.mxu0 0.0
      %926 = vmatprep.subr.mxu0 0.0
      %927 = vmatpush1.msra.mxu0 0.0
      %928 = vmatprep.subr.mxu0 0.0
      %929 = vmatpush1.msra.mxu0 0.0
      %930 = vmatprep.subr.mxu0 0.0
      %931 = vmatpush1.msra.mxu0 0.0
      %932 = vmatprep.subr.mxu0 0.0
      %933 = vmatpush1.msra.mxu0 0.0
      %934 = vmatprep.subr.mxu0 0.0
      %935 = vmatpush1.msra.mxu0 0.0
      %936 = vmatprep.subr.mxu0 0.0
      %937 = vmatpush1.msra.mxu0 0.0
      %938 = vmatprep.subr.mxu0 0.0
      %939 = vmatpush1.msra.mxu0 0.0
      %940 = vmatprep.subr.mxu0 0.0
      %941 = vmatpush1.msra.mxu0 0.0
      %942 = vmatprep.subr.mxu0 0.0
      %943 = vmatpush1.msra.mxu0 0.0
      %944 = vmatprep.subr.mxu0 0.0
      %945 = vmatpush1.msra.mxu0 0.0
      %946 = vmatprep.subr.mxu0 0.0
      %947 = vmatpush1.msra.mxu0 0.0
      %948 = vmatprep.subr.mxu0 0.0
      %949 = vmatpush1.msra.mxu0 0.0
      %950 = vmatprep.subr.mxu0 0.0
      %951 = vmatpush1.msra.mxu0 0.0
      %952 = vmatprep.subr.mxu0 0.0
      %953 = vmatpush1.msra.mxu0 0.0
      %954 = vmatprep.subr.mxu0 0.0
      %955 = vmatpush1.msra.mxu0 0.0
      %956 = vmatprep.subr.mxu0 0.0
      %957 = vmatpush1.msra.mxu0 0.0
      %958 = vmatprep.subr.mxu0 0.0
      %959 = vmatpush1.msra.mxu0 0.0
      %960 = vmatprep.subr.mxu0 0.0
      %961 = vmatpush1.msra.mxu0 0.0
      %962 = vmatprep.subr.mxu0 0.0
      %963 = vmatpush1.msra.mxu0 0.0
      %964 = vmatprep.subr.mxu0 0.0
      %965 = vmatpush1.msra.mxu0 0.0
      %966 = vmatprep.subr.mxu0 0.0
      %967 = vmatpush1.msra.mxu0 0.0
      %968 = vmatprep.subr.mxu0 0.0
      %969 = vmatpush1.msra.mxu0 0.0
      %970 = vmatprep.subr.mxu0 0.0
      %971 = vmatpush1.msra.mxu0 0.0
      %972 = vmatprep.mubr.f32.mxu0 0.0
      %973 = vmatmul.mubr.f32.gmra.mrb[0].mxu0 %v899
      %v974 = vpop.f32.mrb[0].mxu0
      %v975 = vadd.f32 %v895, %v974
      %v976 = vpop.f32.mrb[0].mxu0
      %977 = vmatprep.mubr.f32.mxu0 0.0
      %978 = vmatmul.mubr.f32.gmra.mrb[0].mxu0 %v902
      %v979 = vpop.f32.mrb[0].mxu0
      %v980 = vadd.f32 %v895, %v979
      %v981 = vpop.f32.mrb[0].mxu0
      %982 = vdwg.mxu0
      %v983 = vld [vmem:[%s4] sm:$0x1]
      %v984 = vld [vmem:[%s5] sm:$0x1]
      %vm985 = vcmask 130048
      %v987 = vsel %vm985, %v635, 0
      %989 = vmatprep.subr.mxu0 0.0
      %990 = vmatpush1.msra.mxu0 %v975
      %991 = vmatprep.subr.mxu0 0.0
      %992 = vmatpush1.msra.mxu0 %v980
      %993 = vmatprep.subr.mxu0 0.0
      %994 = vmatpush1.msra.mxu0 0.0
      %995 = vmatprep.subr.mxu0 0.0
      %996 = vmatpush1.msra.mxu0 0.0
      %997 = vmatprep.subr.mxu0 0.0
      %998 = vmatpush1.msra.mxu0 0.0
      %999 = vmatprep.subr.mxu0 0.0
      %1000 = vmatpush1.msra.mxu0 0.0
      %1001 = vmatprep.subr.mxu0 0.0
      %1002 = vmatpush1.msra.mxu0 0.0
      %1003 = vmatprep.subr.mxu0 0.0
      %1004 = vmatpush1.msra.mxu0 0.0
      %1005 = vmatprep.subr.mxu0 0.0
      %1006 = vmatpush1.msra.mxu0 0.0
      %1007 = vmatprep.subr.mxu0 0.0
      %1008 = vmatpush1.msra.mxu0 0.0
      %1009 = vmatprep.subr.mxu0 0.0
      %1010 = vmatpush1.msra.mxu0 0.0
      %1011 = vmatprep.subr.mxu0 0.0
      %1012 = vmatpush1.msra.mxu0 0.0
      %1013 = vmatprep.subr.mxu0 0.0
      %1014 = vmatpush1.msra.mxu0 0.0
      %1015 = vmatprep.subr.mxu0 0.0
      %1016 = vmatpush1.msra.mxu0 0.0
      %1017 = vmatprep.subr.mxu0 0.0
      %1018 = vmatpush1.msra.mxu0 0.0
      %1019 = vmatprep.subr.mxu0 0.0
      %1020 = vmatpush1.msra.mxu0 0.0
      %1021 = vmatprep.subr.mxu0 0.0
      %1022 = vmatpush1.msra.mxu0 0.0
      %1023 = vmatprep.subr.mxu0 0.0
      %1024 = vmatpush1.msra.mxu0 0.0
      %1025 = vmatprep.subr.mxu0 0.0
      %1026 = vmatpush1.msra.mxu0 0.0
      %1027 = vmatprep.subr.mxu0 0.0
      %1028 = vmatpush1.msra.mxu0 0.0
      %1029 = vmatprep.subr.mxu0 0.0
      %1030 = vmatpush1.msra.mxu0 0.0
      %1031 = vmatprep.subr.mxu0 0.0
      %1032 = vmatpush1.msra.mxu0 0.0
      %1033 = vmatprep.subr.mxu0 0.0
      %1034 = vmatpush1.msra.mxu0 0.0
      %1035 = vmatprep.subr.mxu0 0.0
      %1036 = vmatpush1.msra.mxu0 0.0
      %1037 = vmatprep.subr.mxu0 0.0
      %1038 = vmatpush1.msra.mxu0 0.0
      %1039 = vmatprep.subr.mxu0 0.0
      %1040 = vmatpush1.msra.mxu0 0.0
      %1041 = vmatprep.subr.mxu0 0.0
      %1042 = vmatpush1.msra.mxu0 0.0
      %1043 = vmatprep.subr.mxu0 0.0
      %1044 = vmatpush1.msra.mxu0 0.0
      %1045 = vmatprep.subr.mxu0 0.0
      %1046 = vmatpush1.msra.mxu0 0.0
      %1047 = vmatprep.subr.mxu0 0.0
      %1048 = vmatpush1.msra.mxu0 0.0
      %1049 = vmatprep.subr.mxu0 0.0
      %1050 = vmatpush1.msra.mxu0 0.0
      %1051 = vmatprep.subr.mxu0 0.0
      %1052 = vmatpush1.msra.mxu0 0.0
      %1053 = vmatprep.mubr.f32.mxu0 0.0
      %1054 = vmatmul.mubr.f32.gmra.mrb[0].mxu0 %v987
      %v1055 = vpop.f32.mrb[0].mxu0
      %v1056 = vadd.f32 0.0, %v1055
      %v1057 = vpop.f32.mrb[0].mxu0
      %1058 = vdwg.mxu0
      %vm1059 = vcmask 64512
      %v1061 = vsel %vm1059, %v1056, 0
      %1063 = vmatprep.subr.mxu0 0.0
      %1064 = vmatpush1.msra.mxu0 %v638
      %1065 = vmatprep.subr.mxu0 0.0
      %1066 = vmatpush1.msra.mxu0 0.0
      %1067 = vmatprep.subr.mxu0 0.0
      %1068 = vmatpush1.msra.mxu0 0.0
      %1069 = vmatprep.subr.mxu0 0.0
      %1070 = vmatpush1.msra.mxu0 0.0
      %1071 = vmatprep.subr.mxu0 0.0
      %1072 = vmatpush1.msra.mxu0 0.0
      %1073 = vmatprep.subr.mxu0 0.0
      %1074 = vmatpush1.msra.mxu0 0.0
      %1075 = vmatprep.subr.mxu0 0.0
      %1076 = vmatpush1.msra.mxu0 0.0
      %1077 = vmatprep.subr.mxu0 0.0
      %1078 = vmatpush1.msra.mxu0 0.0
      %1079 = vmatprep.subr.mxu0 0.0
      %1080 = vmatpush1.msra.mxu0 0.0
      %1081 = vmatprep.subr.mxu0 0.0
      %1082 = vmatpush1.msra.mxu0 0.0
      %1083 = vmatprep.subr.mxu0 0.0
      %1084 = vmatpush1.msra.mxu0 0.0
      %1085 = vmatprep.subr.mxu0 0.0
      %1086 = vmatpush1.msra.mxu0 0.0
      %1087 = vmatprep.subr.mxu0 0.0
      %1088 = vmatpush1.msra.mxu0 0.0
      %1089 = vmatprep.subr.mxu0 0.0
      %1090 = vmatpush1.msra.mxu0 0.0
      %1091 = vmatprep.subr.mxu0 0.0
      %1092 = vmatpush1.msra.mxu0 0.0
      %1093 = vmatprep.subr.mxu0 0.0
      %1094 = vmatpush1.msra.mxu0 0.0
      %1095 = vmatprep.subr.mxu0 0.0
      %1096 = vmatpush1.msra.mxu0 0.0
      %1097 = vmatprep.subr.mxu0 0.0
      %1098 = vmatpush1.msra.mxu0 0.0
      %1099 = vmatprep.subr.mxu0 0.0
      %1100 = vmatpush1.msra.mxu0 0.0
      %1101 = vmatprep.subr.mxu0 0.0
      %1102 = vmatpush1.msra.mxu0 0.0
      %1103 = vmatprep.subr.mxu0 0.0
      %1104 = vmatpush1.msra.mxu0 0.0
      %1105 = vmatprep.subr.mxu0 0.0
      %1106 = vmatpush1.msra.mxu0 0.0
      %1107 = vmatprep.subr.mxu0 0.0
      %1108 = vmatpush1.msra.mxu0 0.0
      %1109 = vmatprep.subr.mxu0 0.0
      %1110 = vmatpush1.msra.mxu0 0.0
      %1111 = vmatprep.subr.mxu0 0.0
      %1112 = vmatpush1.msra.mxu0 0.0
      %1113 = vmatprep.subr.mxu0 0.0
      %1114 = vmatpush1.msra.mxu0 0.0
      %1115 = vmatprep.subr.mxu0 0.0
      %1116 = vmatpush1.msra.mxu0 0.0
      %1117 = vmatprep.subr.mxu0 0.0
      %1118 = vmatpush1.msra.mxu0 0.0
      %1119 = vmatprep.subr.mxu0 0.0
      %1120 = vmatpush1.msra.mxu0 0.0
      %1121 = vmatprep.subr.mxu0 0.0
      %1122 = vmatpush1.msra.mxu0 0.0
      %1123 = vmatprep.subr.mxu0 0.0
      %1124 = vmatpush1.msra.mxu0 0.0
      %1125 = vmatprep.subr.mxu0 0.0
      %1126 = vmatpush1.msra.mxu0 0.0
      %1127 = vmatprep.mubr.f32.mxu0 0.0
      %1128 = vmatmul.mubr.f32.gmra.mrb[0].mxu0 %v1061
      %v1129 = vpop.f32.mrb[0].mxu0
      %v1130 = vadd.f32 0.0, %v1129
      %v1131 = vpop.f32.mrb[0].mxu0
      %1132 = vdwg.mxu0
      %v1133 = vrcp.pop 16.0
      %v1134 = vmul.f32 %v1130, %v1133
      %v1136 = vsel %vm1059, %v1134, 0
      %1138 = vmatprep.subr.mxu0 0.0
      %1139 = vmatpush1.msra.mxu0 %v639
      %1140 = vmatprep.subr.mxu0 0.0
      %1141 = vmatpush1.msra.mxu0 0.0
      %1142 = vmatprep.subr.mxu0 0.0
      %1143 = vmatpush1.msra.mxu0 0.0
      %1144 = vmatprep.subr.mxu0 0.0
      %1145 = vmatpush1.msra.mxu0 0.0
      %1146 = vmatprep.subr.mxu0 0.0
      %1147 = vmatpush1.msra.mxu0 0.0
      %1148 = vmatprep.subr.mxu0 0.0
      %1149 = vmatpush1.msra.mxu0 0.0
      %1150 = vmatprep.subr.mxu0 0.0
      %1151 = vmatpush1.msra.mxu0 0.0
      %1152 = vmatprep.subr.mxu0 0.0
      %1153 = vmatpush1.msra.mxu0 0.0
      %1154 = vmatprep.subr.mxu0 0.0
      %1155 = vmatpush1.msra.mxu0 0.0
      %1156 = vmatprep.subr.mxu0 0.0
      %1157 = vmatpush1.msra.mxu0 0.0
      %1158 = vmatprep.subr.mxu0 0.0
      %1159 = vmatpush1.msra.mxu0 0.0
      %1160 = vmatprep.subr.mxu0 0.0
      %1161 = vmatpush1.msra.mxu0 0.0
      %1162 = vmatprep.subr.mxu0 0.0
      %1163 = vmatpush1.msra.mxu0 0.0
      %1164 = vmatprep.subr.mxu0 0.0
      %1165 = vmatpush1.msra.mxu0 0.0
      %1166 = vmatprep.subr.mxu0 0.0
      %1167 = vmatpush1.msra.mxu0 0.0
      %1168 = vmatprep.subr.mxu0 0.0
      %1169 = vmatpush1.msra.mxu0 0.0
      %1170 = vmatprep.subr.mxu0 0.0
      %1171 = vmatpush1.msra.mxu0 0.0
      %1172 = vmatprep.subr.mxu0 0.0
      %1173 = vmatpush1.msra.mxu0 0.0
      %1174 = vmatprep.subr.mxu0 0.0
      %1175 = vmatpush1.msra.mxu0 0.0
      %1176 = vmatprep.subr.mxu0 0.0
      %1177 = vmatpush1.msra.mxu0 0.0
      %1178 = vmatprep.subr.mxu0 0.0
      %1179 = vmatpush1.msra.mxu0 0.0
      %1180 = vmatprep.subr.mxu0 0.0
      %1181 = vmatpush1.msra.mxu0 0.0
      %1182 = vmatprep.subr.mxu0 0.0
      %1183 = vmatpush1.msra.mxu0 0.0
      %1184 = vmatprep.subr.mxu0 0.0
      %1185 = vmatpush1.msra.mxu0 0.0
      %1186 = vmatprep.subr.mxu0 0.0
      %1187 = vmatpush1.msra.mxu0 0.0
      %1188 = vmatprep.subr.mxu0 0.0
      %1189 = vmatpush1.msra.mxu0 0.0
      %1190 = vmatprep.subr.mxu0 0.0
      %1191 = vmatpush1.msra.mxu0 0.0
      %1192 = vmatprep.subr.mxu0 0.0
      %1193 = vmatpush1.msra.mxu0 0.0
      %1194 = vmatprep.subr.mxu0 0.0
      %1195 = vmatpush1.msra.mxu0 0.0
      %1196 = vmatprep.subr.mxu0 0.0
      %1197 = vmatpush1.msra.mxu0 0.0
      %1198 = vmatprep.subr.mxu0 0.0
      %1199 = vmatpush1.msra.mxu0 0.0
      %1200 = vmatprep.subr.mxu0 0.0
      %1201 = vmatpush1.msra.mxu0 0.0
      %1202 = vmatprep.mubr.f32.mxu0 0.0
      %1203 = vmatmul.mubr.f32.gmra.mrb[0].mxu0 %v1136
      %v1204 = vpop.f32.mrb[0].mxu0
      %v1205 = vadd.f32 0.0, %v1204
      %v1206 = vpop.f32.mrb[0].mxu0
      %1207 = vdwg.mxu0
      %v1209 = vsel %vm810, %v1205, 0
      %1211 = vmatprep.subr.mxu0 0.0
      %1212 = vmatpush1.msra.mxu0 %v1209
      %1213 = vmatprep.subr.mxu0 0.0
      %1214 = vmatpush1.msra.mxu0 0.0
      %1215 = vmatprep.subr.mxu0 0.0
      %1216 = vmatpush1.msra.mxu0 0.0
      %1217 = vmatprep.subr.mxu0 0.0
      %1218 = vmatpush1.msra.mxu0 0.0
      %1219 = vmatprep.subr.mxu0 0.0
      %1220 = vmatpush1.msra.mxu0 0.0
      %1221 = vmatprep.subr.mxu0 0.0
      %1222 = vmatpush1.msra.mxu0 0.0
      %1223 = vmatprep.subr.mxu0 0.0
      %1224 = vmatpush1.msra.mxu0 0.0
      %1225 = vmatprep.subr.mxu0 0.0
      %1226 = vmatpush1.msra.mxu0 0.0
      %1227 = vmatprep.subr.mxu0 0.0
      %1228 = vmatpush1.msra.mxu0 0.0
      %1229 = vmatprep.subr.mxu0 0.0
      %1230 = vmatpush1.msra.mxu0 0.0
      %1231 = vmatprep.subr.mxu0 0.0
      %1232 = vmatpush1.msra.mxu0 0.0
      %1233 = vmatprep.subr.mxu0 0.0
      %1234 = vmatpush1.msra.mxu0 0.0
      %1235 = vmatprep.subr.mxu0 0.0
      %1236 = vmatpush1.msra.mxu0 0.0
      %1237 = vmatprep.subr.mxu0 0.0
      %1238 = vmatpush1.msra.mxu0 0.0
      %1239 = vmatprep.subr.mxu0 0.0
      %1240 = vmatpush1.msra.mxu0 0.0
      %1241 = vmatprep.subr.mxu0 0.0
      %1242 = vmatpush1.msra.mxu0 0.0
      %1243 = vmatprep.subr.mxu0 0.0
      %1244 = vmatpush1.msra.mxu0 0.0
      %1245 = vmatprep.subr.mxu0 0.0
      %1246 = vmatpush1.msra.mxu0 0.0
      %1247 = vmatprep.subr.mxu0 0.0
      %1248 = vmatpush1.msra.mxu0 0.0
      %1249 = vmatprep.subr.mxu0 0.0
      %1250 = vmatpush1.msra.mxu0 0.0
      %1251 = vmatprep.subr.mxu0 0.0
      %1252 = vmatpush1.msra.mxu0 0.0
      %1253 = vmatprep.subr.mxu0 0.0
      %1254 = vmatpush1.msra.mxu0 0.0
      %1255 = vmatprep.subr.mxu0 0.0
      %1256 = vmatpush1.msra.mxu0 0.0
      %1257 = vmatprep.subr.mxu0 0.0
      %1258 = vmatpush1.msra.mxu0 0.0
      %1259 = vmatprep.subr.mxu0 0.0
      %1260 = vmatpush1.msra.mxu0 0.0
      %1261 = vmatprep.subr.mxu0 0.0
      %1262 = vmatpush1.msra.mxu0 0.0
      %1263 = vmatprep.subr.mxu0 0.0
      %1264 = vmatpush1.msra.mxu0 0.0
      %1265 = vmatprep.subr.mxu0 0.0
      %1266 = vmatpush1.msra.mxu0 0.0
      %1267 = vmatprep.subr.mxu0 0.0
      %1268 = vmatpush1.msra.mxu0 0.0
      %1269 = vmatprep.subr.mxu0 0.0
      %1270 = vmatpush1.msra.mxu0 0.0
      %1271 = vmatprep.subr.mxu0 0.0
      %1272 = vmatpush1.msra.mxu0 0.0
      %1273 = vmatprep.subr.mxu0 0.0
      %1274 = vmatpush1.msra.mxu0 0.0
      %1275 = vmatprep.mubr.f32.mxu0 0.0
      %1276 = vmatmul.mubr.f32.gmra.mrb[0].mxu0 %v805
      %v1277 = vpop.f32.mrb[0].mxu0
      %v1278 = vadd.f32 0.0, %v1277
      %v1279 = vpop.f32.mrb[0].mxu0
      %1280 = vmatprep.mubr.f32.mxu0 0.0
      %1281 = vmatmul.mubr.f32.gmra.mrb[0].mxu0 %v808
      %v1282 = vpop.f32.mrb[0].mxu0
      %v1283 = vadd.f32 0.0, %v1282
      %v1284 = vpop.f32.mrb[0].mxu0
      %1285 = vdwg.mxu0
      %v1286 = vsub.f32 %v975, %v1278
      %v1287 = vsub.f32 %v980, %v1283
      %v1288 = vmul.f32 %v1286, %v1286
      %v1289 = vmul.f32 %v1287, %v1287
      %1290 = vmatprep.subr.mxu0 0.0
      %1291 = vmatpush1.msra.mxu0 %v1288
      %1292 = vmatprep.subr.mxu0 0.0
      %1293 = vmatpush1.msra.mxu0 %v1289
      %1294 = vmatprep.subr.mxu0 0.0
      %1295 = vmatpush1.msra.mxu0 0.0
      %1296 = vmatprep.subr.mxu0 0.0
      %1297 = vmatpush1.msra.mxu0 0.0
      %1298 = vmatprep.subr.mxu0 0.0
      %1299 = vmatpush1.msra.mxu0 0.0
      %1300 = vmatprep.subr.mxu0 0.0
      %1301 = vmatpush1.msra.mxu0 0.0
      %1302 = vmatprep.subr.mxu0 0.0
      %1303 = vmatpush1.msra.mxu0 0.0
      %1304 = vmatprep.subr.mxu0 0.0
      %1305 = vmatpush1.msra.mxu0 0.0
      %1306 = vmatprep.subr.mxu0 0.0
      %1307 = vmatpush1.msra.mxu0 0.0
      %1308 = vmatprep.subr.mxu0 0.0
      %1309 = vmatpush1.msra.mxu0 0.0
      %1310 = vmatprep.subr.mxu0 0.0
      %1311 = vmatpush1.msra.mxu0 0.0
      %1312 = vmatprep.subr.mxu0 0.0
      %1313 = vmatpush1.msra.mxu0 0.0
      %1314 = vmatprep.subr.mxu0 0.0
      %1315 = vmatpush1.msra.mxu0 0.0
      %1316 = vmatprep.subr.mxu0 0.0
      %1317 = vmatpush1.msra.mxu0 0.0
      %1318 = vmatprep.subr.mxu0 0.0
      %1319 = vmatpush1.msra.mxu0 0.0
      %1320 = vmatprep.subr.mxu0 0.0
      %1321 = vmatpush1.msra.mxu0 0.0
      %1322 = vmatprep.subr.mxu0 0.0
      %1323 = vmatpush1.msra.mxu0 0.0
      %1324 = vmatprep.subr.mxu0 0.0
      %1325 = vmatpush1.msra.mxu0 0.0
      %1326 = vmatprep.subr.mxu0 0.0
      %1327 = vmatpush1.msra.mxu0 0.0
      %1328 = vmatprep.subr.mxu0 0.0
      %1329 = vmatpush1.msra.mxu0 0.0
      %1330 = vmatprep.subr.mxu0 0.0
      %1331 = vmatpush1.msra.mxu0 0.0
      %1332 = vmatprep.subr.mxu0 0.0
      %1333 = vmatpush1.msra.mxu0 0.0
      %1334 = vmatprep.subr.mxu0 0.0
      %1335 = vmatpush1.msra.mxu0 0.0
      %1336 = vmatprep.subr.mxu0 0.0
      %1337 = vmatpush1.msra.mxu0 0.0
      %1338 = vmatprep.subr.mxu0 0.0
      %1339 = vmatpush1.msra.mxu0 0.0
      %1340 = vmatprep.subr.mxu0 0.0
      %1341 = vmatpush1.msra.mxu0 0.0
      %1342 = vmatprep.subr.mxu0 0.0
      %1343 = vmatpush1.msra.mxu0 0.0
      %1344 = vmatprep.subr.mxu0 0.0
      %1345 = vmatpush1.msra.mxu0 0.0
      %1346 = vmatprep.subr.mxu0 0.0
      %1347 = vmatpush1.msra.mxu0 0.0
      %1348 = vmatprep.subr.mxu0 0.0
      %1349 = vmatpush1.msra.mxu0 0.0
      %1350 = vmatprep.subr.mxu0 0.0
      %1351 = vmatpush1.msra.mxu0 0.0
      %1352 = vmatprep.subr.mxu0 0.0
      %1353 = vmatpush1.msra.mxu0 0.0
      %1354 = vmatprep.mubr.f32.mxu0 0.0
      %1355 = vmatmul.mubr.f32.gmra.mrb[0].mxu0 %v987
      %v1356 = vpop.f32.mrb[0].mxu0
      %v1357 = vadd.f32 0.0, %v1356
      %v1358 = vpop.f32.mrb[0].mxu0
      %1359 = vdwg.mxu0
      %v1361 = vsel %vm1059, %v1357, 0
      %1363 = vmatprep.subr.mxu0 0.0
      %1364 = vmatpush1.msra.mxu0 %v638
      %1365 = vmatprep.subr.mxu0 0.0
      %1366 = vmatpush1.msra.mxu0 0.0
      %1367 = vmatprep.subr.mxu0 0.0
      %1368 = vmatpush1.msra.mxu0 0.0
      %1369 = vmatprep.subr.mxu0 0.0
      %1370 = vmatpush1.msra.mxu0 0.0
      %1371 = vmatprep.subr.mxu0 0.0
      %1372 = vmatpush1.msra.mxu0 0.0
      %1373 = vmatprep.subr.mxu0 0.0
      %1374 = vmatpush1.msra.mxu0 0.0
      %1375 = vmatprep.subr.mxu0 0.0
      %1376 = vmatpush1.msra.mxu0 0.0
      %1377 = vmatprep.subr.mxu0 0.0
      %1378 = vmatpush1.msra.mxu0 0.0
      %1379 = vmatprep.subr.mxu0 0.0
      %1380 = vmatpush1.msra.mxu0 0.0
      %1381 = vmatprep.subr.mxu0 0.0
      %1382 = vmatpush1.msra.mxu0 0.0
      %1383 = vmatprep.subr.mxu0 0.0
      %1384 = vmatpush1.msra.mxu0 0.0
      %1385 = vmatprep.subr.mxu0 0.0
      %1386 = vmatpush1.msra.mxu0 0.0
      %1387 = vmatprep.subr.mxu0 0.0
      %1388 = vmatpush1.msra.mxu0 0.0
      %1389 = vmatprep.subr.mxu0 0.0
      %1390 = vmatpush1.msra.mxu0 0.0
      %1391 = vmatprep.subr.mxu0 0.0
      %1392 = vmatpush1.msra.mxu0 0.0
      %1393 = vmatprep.subr.mxu0 0.0
      %1394 = vmatpush1.msra.mxu0 0.0
      %1395 = vmatprep.subr.mxu0 0.0
      %1396 = vmatpush1.msra.mxu0 0.0
      %1397 = vmatprep.subr.mxu0 0.0
      %1398 = vmatpush1.msra.mxu0 0.0
      %1399 = vmatprep.subr.mxu0 0.0
      %1400 = vmatpush1.msra.mxu0 0.0
      %1401 = vmatprep.subr.mxu0 0.0
      %1402 = vmatpush1.msra.mxu0 0.0
      %1403 = vmatprep.subr.mxu0 0.0
      %1404 = vmatpush1.msra.mxu0 0.0
      %1405 = vmatprep.subr.mxu0 0.0
      %1406 = vmatpush1.msra.mxu0 0.0
      %1407 = vmatprep.subr.mxu0 0.0
      %1408 = vmatpush1.msra.mxu0 0.0
      %1409 = vmatprep.subr.mxu0 0.0
      %1410 = vmatpush1.msra.mxu0 0.0
      %1411 = vmatprep.subr.mxu0 0.0
      %1412 = vmatpush1.msra.mxu0 0.0
      %1413 = vmatprep.subr.mxu0 0.0
      %1414 = vmatpush1.msra.mxu0 0.0
      %1415 = vmatprep.subr.mxu0 0.0
      %1416 = vmatpush1.msra.mxu0 0.0
      %1417 = vmatprep.subr.mxu0 0.0
      %1418 = vmatpush1.msra.mxu0 0.0
      %1419 = vmatprep.subr.mxu0 0.0
      %1420 = vmatpush1.msra.mxu0 0.0
      %1421 = vmatprep.subr.mxu0 0.0
      %1422 = vmatpush1.msra.mxu0 0.0
      %1423 = vmatprep.subr.mxu0 0.0
      %1424 = vmatpush1.msra.mxu0 0.0
      %1425 = vmatprep.subr.mxu0 0.0
      %1426 = vmatpush1.msra.mxu0 0.0
      %1427 = vmatprep.mubr.f32.mxu0 0.0
      %1428 = vmatmul.mubr.f32.gmra.mrb[0].mxu0 %v1361
      %v1429 = vpop.f32.mrb[0].mxu0
      %v1430 = vadd.f32 0.0, %v1429
      %v1431 = vpop.f32.mrb[0].mxu0
      %1432 = vdwg.mxu0
      %v1433 = vmul.f32 %v1430, %v1133
      %v1434 = vadd.f32 %v1433, 1e-05
      %v1435 = vrsqrt.pop %v1434
      %v1437 = vsel %vm1059, %v1435, 0
      %1439 = vmatprep.subr.mxu0 0.0
      %1440 = vmatpush1.msra.mxu0 %v639
      %1441 = vmatprep.subr.mxu0 0.0
      %1442 = vmatpush1.msra.mxu0 0.0
      %1443 = vmatprep.subr.mxu0 0.0
      %1444 = vmatpush1.msra.mxu0 0.0
      %1445 = vmatprep.subr.mxu0 0.0
      %1446 = vmatpush1.msra.mxu0 0.0
      %1447 = vmatprep.subr.mxu0 0.0
      %1448 = vmatpush1.msra.mxu0 0.0
      %1449 = vmatprep.subr.mxu0 0.0
      %1450 = vmatpush1.msra.mxu0 0.0
      %1451 = vmatprep.subr.mxu0 0.0
      %1452 = vmatpush1.msra.mxu0 0.0
      %1453 = vmatprep.subr.mxu0 0.0
      %1454 = vmatpush1.msra.mxu0 0.0
      %1455 = vmatprep.subr.mxu0 0.0
      %1456 = vmatpush1.msra.mxu0 0.0
      %1457 = vmatprep.subr.mxu0 0.0
      %1458 = vmatpush1.msra.mxu0 0.0
      %1459 = vmatprep.subr.mxu0 0.0
      %1460 = vmatpush1.msra.mxu0 0.0
      %1461 = vmatprep.subr.mxu0 0.0
      %1462 = vmatpush1.msra.mxu0 0.0
      %1463 = vmatprep.subr.mxu0 0.0
      %1464 = vmatpush1.msra.mxu0 0.0
      %1465 = vmatprep.subr.mxu0 0.0
      %1466 = vmatpush1.msra.mxu0 0.0
      %1467 = vmatprep.subr.mxu0 0.0
      %1468 = vmatpush1.msra.mxu0 0.0
      %1469 = vmatprep.subr.mxu0 0.0
      %1470 = vmatpush1.msra.mxu0 0.0
      %1471 = vmatprep.subr.mxu0 0.0
      %1472 = vmatpush1.msra.mxu0 0.0
      %1473 = vmatprep.subr.mxu0 0.0
      %1474 = vmatpush1.msra.mxu0 0.0
      %1475 = vmatprep.subr.mxu0 0.0
      %1476 = vmatpush1.msra.mxu0 0.0
      %1477 = vmatprep.subr.mxu0 0.0
      %1478 = vmatpush1.msra.mxu0 0.0
      %1479 = vmatprep.subr.mxu0 0.0
      %1480 = vmatpush1.msra.mxu0 0.0
      %1481 = vmatprep.subr.mxu0 0.0
      %1482 = vmatpush1.msra.mxu0 0.0
      %1483 = vmatprep.subr.mxu0 0.0
      %1484 = vmatpush1.msra.mxu0 0.0
      %1485 = vmatprep.subr.mxu0 0.0
      %1486 = vmatpush1.msra.mxu0 0.0
      %1487 = vmatprep.subr.mxu0 0.0
      %1488 = vmatpush1.msra.mxu0 0.0
      %1489 = vmatprep.subr.mxu0 0.0
      %1490 = vmatpush1.msra.mxu0 0.0
      %1491 = vmatprep.subr.mxu0 0.0
      %1492 = vmatpush1.msra.mxu0 0.0
      %1493 = vmatprep.subr.mxu0 0.0
      %1494 = vmatpush1.msra.mxu0 0.0
      %1495 = vmatprep.subr.mxu0 0.0
      %1496 = vmatpush1.msra.mxu0 0.0
      %1497 = vmatprep.subr.mxu0 0.0
      %1498 = vmatpush1.msra.mxu0 0.0
      %1499 = vmatprep.subr.mxu0 0.0
      %1500 = vmatpush1.msra.mxu0 0.0
      %1501 = vmatprep.subr.mxu0 0.0
      %1502 = vmatpush1.msra.mxu0 0.0
      %1503 = vmatprep.mubr.f32.mxu0 0.0
      %1504 = vmatmul.mubr.f32.gmra.mrb[0].mxu0 %v1437
      %v1505 = vpop.f32.mrb[0].mxu0
      %v1506 = vadd.f32 0.0, %v1505
      %v1507 = vpop.f32.mrb[0].mxu0
      %1508 = vdwg.mxu0
      %v1510 = vsel %vm810, %v1506, 0
      %1512 = vmatprep.subr.mxu0 0.0
      %1513 = vmatpush1.msra.mxu0 %v1510
      %1514 = vmatprep.subr.mxu0 0.0
      %1515 = vmatpush1.msra.mxu0 0.0
      %1516 = vmatprep.subr.mxu0 0.0
      %1517 = vmatpush1.msra.mxu0 0.0
      %1518 = vmatprep.subr.mxu0 0.0
      %1519 = vmatpush1.msra.mxu0 0.0
      %1520 = vmatprep.subr.mxu0 0.0
      %1521 = vmatpush1.msra.mxu0 0.0
      %1522 = vmatprep.subr.mxu0 0.0
      %1523 = vmatpush1.msra.mxu0 0.0
      %1524 = vmatprep.subr.mxu0 0.0
      %1525 = vmatpush1.msra.mxu0 0.0
      %1526 = vmatprep.subr.mxu0 0.0
      %1527 = vmatpush1.msra.mxu0 0.0
      %1528 = vmatprep.subr.mxu0 0.0
      %1529 = vmatpush1.msra.mxu0 0.0
      %1530 = vmatprep.subr.mxu0 0.0
      %1531 = vmatpush1.msra.mxu0 0.0
      %1532 = vmatprep.subr.mxu0 0.0
      %1533 = vmatpush1.msra.mxu0 0.0
      %1534 = vmatprep.subr.mxu0 0.0
      %1535 = vmatpush1.msra.mxu0 0.0
      %1536 = vmatprep.subr.mxu0 0.0
      %1537 = vmatpush1.msra.mxu0 0.0
      %1538 = vmatprep.subr.mxu0 0.0
      %1539 = vmatpush1.msra.mxu0 0.0
      %1540 = vmatprep.subr.mxu0 0.0
      %1541 = vmatpush1.msra.mxu0 0.0
      %1542 = vmatprep.subr.mxu0 0.0
      %1543 = vmatpush1.msra.mxu0 0.0
      %1544 = vmatprep.subr.mxu0 0.0
      %1545 = vmatpush1.msra.mxu0 0.0
      %1546 = vmatprep.subr.mxu0 0.0
      %1547 = vmatpush1.msra.mxu0 0.0
      %1548 = vmatprep.subr.mxu0 0.0
      %1549 = vmatpush1.msra.mxu0 0.0
      %1550 = vmatprep.subr.mxu0 0.0
      %1551 = vmatpush1.msra.mxu0 0.0
      %1552 = vmatprep.subr.mxu0 0.0
      %1553 = vmatpush1.msra.mxu0 0.0
      %1554 = vmatprep.subr.mxu0 0.0
      %1555 = vmatpush1.msra.mxu0 0.0
      %1556 = vmatprep.subr.mxu0 0.0
      %1557 = vmatpush1.msra.mxu0 0.0
      %1558 = vmatprep.subr.mxu0 0.0
      %1559 = vmatpush1.msra.mxu0 0.0
      %1560 = vmatprep.subr.mxu0 0.0
      %1561 = vmatpush1.msra.mxu0 0.0
      %1562 = vmatprep.subr.mxu0 0.0
      %1563 = vmatpush1.msra.mxu0 0.0
      %1564 = vmatprep.subr.mxu0 0.0
      %1565 = vmatpush1.msra.mxu0 0.0
      %1566 = vmatprep.subr.mxu0 0.0
      %1567 = vmatpush1.msra.mxu0 0.0
      %1568 = vmatprep.subr.mxu0 0.0
      %1569 = vmatpush1.msra.mxu0 0.0
      %1570 = vmatprep.subr.mxu0 0.0
      %1571 = vmatpush1.msra.mxu0 0.0
      %1572 = vmatprep.subr.mxu0 0.0
      %1573 = vmatpush1.msra.mxu0 0.0
      %1574 = vmatprep.subr.mxu0 0.0
      %1575 = vmatpush1.msra.mxu0 0.0
      %1576 = vmatprep.mubr.f32.mxu0 0.0
      %1577 = vmatmul.mubr.f32.gmra.mrb[0].mxu0 %v805
      %v1578 = vpop.f32.mrb[0].mxu0
      %v1579 = vadd.f32 0.0, %v1578
      %v1580 = vpop.f32.mrb[0].mxu0
      %1581 = vmatprep.mubr.f32.mxu0 0.0
      %1582 = vmatmul.mubr.f32.gmra.mrb[0].mxu0 %v808
      %v1583 = vpop.f32.mrb[0].mxu0
      %v1584 = vadd.f32 0.0, %v1583
      %v1585 = vpop.f32.mrb[0].mxu0
      %1586 = vdwg.mxu0
      %v1587 = vmul.f32 %v1286, %v1579
      %v1588 = vmul.f32 %v1287, %v1584
      %v1590 = vlaneseq
      %v1591 = vshrl.u32 %v1590, 7
      %v1592 = vsub.s32 0, %v1591
      %v1593 = vrot.slane %v983, %v1592
      %v1595 = vmul.f32 %v1587, %v1593
      %v1596 = vmul.f32 %v1588, %v1593
      %v1598 = vlaneseq
      %v1599 = vshrl.u32 %v1598, 7
      %v1600 = vsub.s32 0, %v1599
      %v1601 = vrot.slane %v984, %v1600
      %v1603 = vadd.f32 %v1595, %v1601
      %v1604 = vadd.f32 %v1596, %v1601
      %v1606 = vsel %vm810, %v725, 0
      %1608 = vmatprep.subr.mxu0 0.0
      %1609 = vmatpush1.msra.mxu0 %v1606
      %1610 = vmatprep.subr.mxu0 0.0
      %1611 = vmatpush1.msra.mxu0 0.0
      %1612 = vmatprep.subr.mxu0 0.0
      %1613 = vmatpush1.msra.mxu0 0.0
      %1614 = vmatprep.subr.mxu0 0.0
      %1615 = vmatpush1.msra.mxu0 0.0
      %1616 = vmatprep.subr.mxu0 0.0
      %1617 = vmatpush1.msra.mxu0 0.0
      %1618 = vmatprep.subr.mxu0 0.0
      %1619 = vmatpush1.msra.mxu0 0.0
      %1620 = vmatprep.subr.mxu0 0.0
      %1621 = vmatpush1.msra.mxu0 0.0
      %1622 = vmatprep.subr.mxu0 0.0
      %1623 = vmatpush1.msra.mxu0 0.0
      %1624 = vmatprep.subr.mxu0 0.0
      %1625 = vmatpush1.msra.mxu0 0.0
      %1626 = vmatprep.subr.mxu0 0.0
      %1627 = vmatpush1.msra.mxu0 0.0
      %1628 = vmatprep.subr.mxu0 0.0
      %1629 = vmatpush1.msra.mxu0 0.0
      %1630 = vmatprep.subr.mxu0 0.0
      %1631 = vmatpush1.msra.mxu0 0.0
      %1632 = vmatprep.subr.mxu0 0.0
      %1633 = vmatpush1.msra.mxu0 0.0
      %1634 = vmatprep.subr.mxu0 0.0
      %1635 = vmatpush1.msra.mxu0 0.0
      %1636 = vmatprep.subr.mxu0 0.0
      %1637 = vmatpush1.msra.mxu0 0.0
      %1638 = vmatprep.subr.mxu0 0.0
      %1639 = vmatpush1.msra.mxu0 0.0
      %1640 = vmatprep.subr.mxu0 0.0
      %1641 = vmatpush1.msra.mxu0 0.0
      %1642 = vmatprep.subr.mxu0 0.0
      %1643 = vmatpush1.msra.mxu0 0.0
      %1644 = vmatprep.subr.mxu0 0.0
      %1645 = vmatpush1.msra.mxu0 0.0
      %1646 = vmatprep.subr.mxu0 0.0
      %1647 = vmatpush1.msra.mxu0 0.0
      %1648 = vmatprep.subr.mxu0 0.0
      %1649 = vmatpush1.msra.mxu0 0.0
      %1650 = vmatprep.subr.mxu0 0.0
      %1651 = vmatpush1.msra.mxu0 0.0
      %1652 = vmatprep.subr.mxu0 0.0
      %1653 = vmatpush1.msra.mxu0 0.0
      %1654 = vmatprep.subr.mxu0 0.0
      %1655 = vmatpush1.msra.mxu0 0.0
      %1656 = vmatprep.subr.mxu0 0.0
      %1657 = vmatpush1.msra.mxu0 0.0
      %1658 = vmatprep.subr.mxu0 0.0
      %1659 = vmatpush1.msra.mxu0 0.0
      %1660 = vmatprep.subr.mxu0 0.0
      %1661 = vmatpush1.msra.mxu0 0.0
      %1662 = vmatprep.subr.mxu0 0.0
      %1663 = vmatpush1.msra.mxu0 0.0
      %1664 = vmatprep.subr.mxu0 0.0
      %1665 = vmatpush1.msra.mxu0 0.0
      %1666 = vmatprep.subr.mxu0 0.0
      %1667 = vmatpush1.msra.mxu0 0.0
      %1668 = vmatprep.subr.mxu0 0.0
      %1669 = vmatpush1.msra.mxu0 0.0
      %1670 = vmatprep.subr.mxu0 0.0
      %1671 = vmatpush1.msra.mxu0 0.0
      %1672 = vmatprep.mubr.f32.mxu0 0.0
      %1673 = vmatmul.mubr.f32.gmra.mrb[0].mxu0 %v805
      %v1674 = vpop.f32.mrb[0].mxu0
      %v1675 = vadd.f32 1.0, %v1674
      %v1676 = vpop.f32.mrb[0].mxu0
      %1677 = vmatprep.mubr.f32.mxu0 0.0
      %1678 = vmatmul.mubr.f32.gmra.mrb[0].mxu0 %v808
      %v1679 = vpop.f32.mrb[0].mxu0
      %v1680 = vadd.f32 1.0, %v1679
      %v1681 = vpop.f32.mrb[0].mxu0
      %1682 = vdwg.mxu0
      %v1683 = vmul.f32 %v1603, %v1675
      %v1684 = vmul.f32 %v1604, %v1680
      %v1685 = vadd.f32 %v1683, %v881
      %v1686 = vadd.f32 %v1684, %v886
      %v1687 = vxor.u32 %v1685, 2147483648
      %v1688 = vxor.u32 %v1686, 2147483648
      %v1689 = vmul.f32 %v1687, 1.442695
      %v1690 = vpow.pop %v1689
      %v1691 = vmul.f32 %v1688, 1.442695
      %v1692 = vpow.pop %v1691
      %v1693 = vadd.f32 %v1690, 1.0
      %v1694 = vadd.f32 %v1692, 1.0
      %v1695 = vrcp.pop %v1693
      %v1696 = vmul.f32 1.0, %v1695
      %v1697 = vrcp.pop %v1694
      %v1698 = vmul.f32 1.0, %v1697
      %v1699 = vmul.f32 %v1685, %v1696
      %v1700 = vmul.f32 %v1686, %v1698
      %v1701 = vld [vmem:[%s6] sm:$0xff]
      %v1702 = vld [vmem:[%s7] sm:$0x1]
      %v1704 = vlaneseq
      %v1705 = vshrl.u32 %v1704, 7
      %v1706 = vsub.s32 0, %v1705
      %v1707 = vrot.slane %v1702, %v1706
      %v1710 = vsel %vm1059, %v1699, 0
      %v1713 = vsel %vm1059, %v1700, 0
      %1715 = vmatprep.subr.mxu0 0.0
      %1716 = vmatpush1.msra.mxu0 %v1701
      %1717 = vmatprep.subr.mxu0 0.0
      %1718 = vmatpush1.msra.mxu0 0.0
      %1719 = vmatprep.subr.mxu0 0.0
      %1720 = vmatpush1.msra.mxu0 0.0
      %1721 = vmatprep.subr.mxu0 0.0
      %1722 = vmatpush1.msra.mxu0 0.0
      %1723 = vmatprep.subr.mxu0 0.0
      %1724 = vmatpush1.msra.mxu0 0.0
      %1725 = vmatprep.subr.mxu0 0.0
      %1726 = vmatpush1.msra.mxu0 0.0
      %1727 = vmatprep.subr.mxu0 0.0
      %1728 = vmatpush1.msra.mxu0 0.0
      %1729 = vmatprep.subr.mxu0 0.0
      %1730 = vmatpush1.msra.mxu0 0.0
      %1731 = vmatprep.subr.mxu0 0.0
      %1732 = vmatpush1.msra.mxu0 0.0
      %1733 = vmatprep.subr.mxu0 0.0
      %1734 = vmatpush1.msra.mxu0 0.0
      %1735 = vmatprep.subr.mxu0 0.0
      %1736 = vmatpush1.msra.mxu0 0.0
      %1737 = vmatprep.subr.mxu0 0.0
      %1738 = vmatpush1.msra.mxu0 0.0
      %1739 = vmatprep.subr.mxu0 0.0
      %1740 = vmatpush1.msra.mxu0 0.0
      %1741 = vmatprep.subr.mxu0 0.0
      %1742 = vmatpush1.msra.mxu0 0.0
      %1743 = vmatprep.subr.mxu0 0.0
      %1744 = vmatpush1.msra.mxu0 0.0
      %1745 = vmatprep.subr.mxu0 0.0
      %1746 = vmatpush1.msra.mxu0 0.0
      %1747 = vmatprep.subr.mxu0 0.0
      %1748 = vmatpush1.msra.mxu0 0.0
      %1749 = vmatprep.subr.mxu0 0.0
      %1750 = vmatpush1.msra.mxu0 0.0
      %1751 = vmatprep.subr.mxu0 0.0
      %1752 = vmatpush1.msra.mxu0 0.0
      %1753 = vmatprep.subr.mxu0 0.0
      %1754 = vmatpush1.msra.mxu0 0.0
      %1755 = vmatprep.subr.mxu0 0.0
      %1756 = vmatpush1.msra.mxu0 0.0
      %1757 = vmatprep.subr.mxu0 0.0
      %1758 = vmatpush1.msra.mxu0 0.0
      %1759 = vmatprep.subr.mxu0 0.0
      %1760 = vmatpush1.msra.mxu0 0.0
      %1761 = vmatprep.subr.mxu0 0.0
      %1762 = vmatpush1.msra.mxu0 0.0
      %1763 = vmatprep.subr.mxu0 0.0
      %1764 = vmatpush1.msra.mxu0 0.0
      %1765 = vmatprep.subr.mxu0 0.0
      %1766 = vmatpush1.msra.mxu0 0.0
      %1767 = vmatprep.subr.mxu0 0.0
      %1768 = vmatpush1.msra.mxu0 0.0
      %1769 = vmatprep.subr.mxu0 0.0
      %1770 = vmatpush1.msra.mxu0 0.0
      %1771 = vmatprep.subr.mxu0 0.0
      %1772 = vmatpush1.msra.mxu0 0.0
      %1773 = vmatprep.subr.mxu0 0.0
      %1774 = vmatpush1.msra.mxu0 0.0
      %1775 = vmatprep.subr.mxu0 0.0
      %1776 = vmatpush1.msra.mxu0 0.0
      %1777 = vmatprep.subr.mxu0 0.0
      %1778 = vmatpush1.msra.mxu0 0.0
      %1779 = vmatprep.mubr.f32.mxu0 0.0
      %1780 = vmatmul.mubr.f32.gmra.mrb[0].mxu0 %v1710
      %v1781 = vpop.f32.mrb[0].mxu0
      %v1782 = vadd.f32 %v1707, %v1781
      %v1783 = vpop.f32.mrb[0].mxu0
      %1784 = vmatprep.mubr.f32.mxu0 0.0
      %1785 = vmatmul.mubr.f32.gmra.mrb[0].mxu0 %v1713
      %v1786 = vpop.f32.mrb[0].mxu0
      %v1787 = vadd.f32 %v1707, %v1786
      %v1788 = vpop.f32.mrb[0].mxu0
      %1789 = vdwg.mxu0
      %v1790 = vld [vmem:[%s8] sm:$0x1]
      %v1791 = vld [vmem:[%s9] sm:$0x1]
      %1792 = vmatprep.subr.mxu0 0.0
      %1793 = vmatpush1.msra.mxu0 %v1782
      %1794 = vmatprep.subr.mxu0 0.0
      %1795 = vmatpush1.msra.mxu0 %v1787
      %1796 = vmatprep.subr.mxu0 0.0
      %1797 = vmatpush1.msra.mxu0 0.0
      %1798 = vmatprep.subr.mxu0 0.0
      %1799 = vmatpush1.msra.mxu0 0.0
      %1800 = vmatprep.subr.mxu0 0.0
      %1801 = vmatpush1.msra.mxu0 0.0
      %1802 = vmatprep.subr.mxu0 0.0
      %1803 = vmatpush1.msra.mxu0 0.0
      %1804 = vmatprep.subr.mxu0 0.0
      %1805 = vmatpush1.msra.mxu0 0.0
      %1806 = vmatprep.subr.mxu0 0.0
      %1807 = vmatpush1.msra.mxu0 0.0
      %1808 = vmatprep.subr.mxu0 0.0
      %1809 = vmatpush1.msra.mxu0 0.0
      %1810 = vmatprep.subr.mxu0 0.0
      %1811 = vmatpush1.msra.mxu0 0.0
      %1812 = vmatprep.subr.mxu0 0.0
      %1813 = vmatpush1.msra.mxu0 0.0
      %1814 = vmatprep.subr.mxu0 0.0
      %1815 = vmatpush1.msra.mxu0 0.0
      %1816 = vmatprep.subr.mxu0 0.0
      %1817 = vmatpush1.msra.mxu0 0.0
      %1818 = vmatprep.subr.mxu0 0.0
      %1819 = vmatpush1.msra.mxu0 0.0
      %1820 = vmatprep.subr.mxu0 0.0
      %1821 = vmatpush1.msra.mxu0 0.0
      %1822 = vmatprep.subr.mxu0 0.0
      %1823 = vmatpush1.msra.mxu0 0.0
      %1824 = vmatprep.subr.mxu0 0.0
      %1825 = vmatpush1.msra.mxu0 0.0
      %1826 = vmatprep.subr.mxu0 0.0
      %1827 = vmatpush1.msra.mxu0 0.0
      %1828 = vmatprep.subr.mxu0 0.0
      %1829 = vmatpush1.msra.mxu0 0.0
      %1830 = vmatprep.subr.mxu0 0.0
      %1831 = vmatpush1.msra.mxu0 0.0
      %1832 = vmatprep.subr.mxu0 0.0
      %1833 = vmatpush1.msra.mxu0 0.0
      %1834 = vmatprep.subr.mxu0 0.0
      %1835 = vmatpush1.msra.mxu0 0.0
      %1836 = vmatprep.subr.mxu0 0.0
      %1837 = vmatpush1.msra.mxu0 0.0
      %1838 = vmatprep.subr.mxu0 0.0
      %1839 = vmatpush1.msra.mxu0 0.0
      %1840 = vmatprep.subr.mxu0 0.0
      %1841 = vmatpush1.msra.mxu0 0.0
      %1842 = vmatprep.subr.mxu0 0.0
      %1843 = vmatpush1.msra.mxu0 0.0
      %1844 = vmatprep.subr.mxu0 0.0
      %1845 = vmatpush1.msra.mxu0 0.0
      %1846 = vmatprep.subr.mxu0 0.0
      %1847 = vmatpush1.msra.mxu0 0.0
      %1848 = vmatprep.subr.mxu0 0.0
      %1849 = vmatpush1.msra.mxu0 0.0
      %1850 = vmatprep.subr.mxu0 0.0
      %1851 = vmatpush1.msra.mxu0 0.0
      %1852 = vmatprep.subr.mxu0 0.0
      %1853 = vmatpush1.msra.mxu0 0.0
      %1854 = vmatprep.subr.mxu0 0.0
      %1855 = vmatpush1.msra.mxu0 0.0
      %1856 = vmatprep.mubr.f32.mxu0 0.0
      %1857 = vmatmul.mubr.f32.gmra.mrb[0].mxu0 %v987
      %v1858 = vpop.f32.mrb[0].mxu0
      %v1859 = vadd.f32 0.0, %v1858
      %v1860 = vpop.f32.mrb[0].mxu0
      %1861 = vdwg.mxu0
      %v1863 = vsel %vm1059, %v1859, 0
      %1865 = vmatprep.subr.mxu0 0.0
      %1866 = vmatpush1.msra.mxu0 %v638
      %1867 = vmatprep.subr.mxu0 0.0
      %1868 = vmatpush1.msra.mxu0 0.0
      %1869 = vmatprep.subr.mxu0 0.0
      %1870 = vmatpush1.msra.mxu0 0.0
      %1871 = vmatprep.subr.mxu0 0.0
      %1872 = vmatpush1.msra.mxu0 0.0
      %1873 = vmatprep.subr.mxu0 0.0
      %1874 = vmatpush1.msra.mxu0 0.0
      %1875 = vmatprep.subr.mxu0 0.0
      %1876 = vmatpush1.msra.mxu0 0.0
      %1877 = vmatprep.subr.mxu0 0.0
      %1878 = vmatpush1.msra.mxu0 0.0
      %1879 = vmatprep.subr.mxu0 0.0
      %1880 = vmatpush1.msra.mxu0 0.0
      %1881 = vmatprep.subr.mxu0 0.0
      %1882 = vmatpush1.msra.mxu0 0.0
      %1883 = vmatprep.subr.mxu0 0.0
      %1884 = vmatpush1.msra.mxu0 0.0
      %1885 = vmatprep.subr.mxu0 0.0
      %1886 = vmatpush1.msra.mxu0 0.0
      %1887 = vmatprep.subr.mxu0 0.0
      %1888 = vmatpush1.msra.mxu0 0.0
      %1889 = vmatprep.subr.mxu0 0.0
      %1890 = vmatpush1.msra.mxu0 0.0
      %1891 = vmatprep.subr.mxu0 0.0
      %1892 = vmatpush1.msra.mxu0 0.0
      %1893 = vmatprep.subr.mxu0 0.0
      %1894 = vmatpush1.msra.mxu0 0.0
      %1895 = vmatprep.subr.mxu0 0.0
      %1896 = vmatpush1.msra.mxu0 0.0
      %1897 = vmatprep.subr.mxu0 0.0
      %1898 = vmatpush1.msra.mxu0 0.0
      %1899 = vmatprep.subr.mxu0 0.0
      %1900 = vmatpush1.msra.mxu0 0.0
      %1901 = vmatprep.subr.mxu0 0.0
      %1902 = vmatpush1.msra.mxu0 0.0
      %1903 = vmatprep.subr.mxu0 0.0
      %1904 = vmatpush1.msra.mxu0 0.0
      %1905 = vmatprep.subr.mxu0 0.0
      %1906 = vmatpush1.msra.mxu0 0.0
      %1907 = vmatprep.subr.mxu0 0.0
      %1908 = vmatpush1.msra.mxu0 0.0
      %1909 = vmatprep.subr.mxu0 0.0
      %1910 = vmatpush1.msra.mxu0 0.0
      %1911 = vmatprep.subr.mxu0 0.0
      %1912 = vmatpush1.msra.mxu0 0.0
      %1913 = vmatprep.subr.mxu0 0.0
      %1914 = vmatpush1.msra.mxu0 0.0
      %1915 = vmatprep.subr.mxu0 0.0
      %1916 = vmatpush1.msra.mxu0 0.0
      %1917 = vmatprep.subr.mxu0 0.0
      %1918 = vmatpush1.msra.mxu0 0.0
      %1919 = vmatprep.subr.mxu0 0.0
      %1920 = vmatpush1.msra.mxu0 0.0
      %1921 = vmatprep.subr.mxu0 0.0
      %1922 = vmatpush1.msra.mxu0 0.0
      %1923 = vmatprep.subr.mxu0 0.0
      %1924 = vmatpush1.msra.mxu0 0.0
      %1925 = vmatprep.subr.mxu0 0.0
      %1926 = vmatpush1.msra.mxu0 0.0
      %1927 = vmatprep.subr.mxu0 0.0
      %1928 = vmatpush1.msra.mxu0 0.0
      %1929 = vmatprep.mubr.f32.mxu0 0.0
      %1930 = vmatmul.mubr.f32.gmra.mrb[0].mxu0 %v1863
      %v1931 = vpop.f32.mrb[0].mxu0
      %v1932 = vadd.f32 0.0, %v1931
      %v1933 = vpop.f32.mrb[0].mxu0
      %1934 = vdwg.mxu0
      %v1935 = vmul.f32 %v1932, %v1133
      %v1937 = vsel %vm1059, %v1935, 0
      %1939 = vmatprep.subr.mxu0 0.0
      %1940 = vmatpush1.msra.mxu0 %v639
      %1941 = vmatprep.subr.mxu0 0.0
      %1942 = vmatpush1.msra.mxu0 0.0
      %1943 = vmatprep.subr.mxu0 0.0
      %1944 = vmatpush1.msra.mxu0 0.0
      %1945 = vmatprep.subr.mxu0 0.0
      %1946 = vmatpush1.msra.mxu0 0.0
      %1947 = vmatprep.subr.mxu0 0.0
      %1948 = vmatpush1.msra.mxu0 0.0
      %1949 = vmatprep.subr.mxu0 0.0
      %1950 = vmatpush1.msra.mxu0 0.0
      %1951 = vmatprep.subr.mxu0 0.0
      %1952 = vmatpush1.msra.mxu0 0.0
      %1953 = vmatprep.subr.mxu0 0.0
      %1954 = vmatpush1.msra.mxu0 0.0
      %1955 = vmatprep.subr.mxu0 0.0
      %1956 = vmatpush1.msra.mxu0 0.0
      %1957 = vmatprep.subr.mxu0 0.0
      %1958 = vmatpush1.msra.mxu0 0.0
      %1959 = vmatprep.subr.mxu0 0.0
      %1960 = vmatpush1.msra.mxu0 0.0
      %1961 = vmatprep.subr.mxu0 0.0
      %1962 = vmatpush1.msra.mxu0 0.0
      %1963 = vmatprep.subr.mxu0 0.0
      %1964 = vmatpush1.msra.mxu0 0.0
      %1965 = vmatprep.subr.mxu0 0.0
      %1966 = vmatpush1.msra.mxu0 0.0
      %1967 = vmatprep.subr.mxu0 0.0
      %1968 = vmatpush1.msra.mxu0 0.0
      %1969 = vmatprep.subr.mxu0 0.0
      %1970 = vmatpush1.msra.mxu0 0.0
      %1971 = vmatprep.subr.mxu0 0.0
      %1972 = vmatpush1.msra.mxu0 0.0
      %1973 = vmatprep.subr.mxu0 0.0
      %1974 = vmatpush1.msra.mxu0 0.0
      %1975 = vmatprep.subr.mxu0 0.0
      %1976 = vmatpush1.msra.mxu0 0.0
      %1977 = vmatprep.subr.mxu0 0.0
      %1978 = vmatpush1.msra.mxu0 0.0
      %1979 = vmatprep.subr.mxu0 0.0
      %1980 = vmatpush1.msra.mxu0 0.0
      %1981 = vmatprep.subr.mxu0 0.0
      %1982 = vmatpush1.msra.mxu0 0.0
      %1983 = vmatprep.subr.mxu0 0.0
      %1984 = vmatpush1.msra.mxu0 0.0
      %1985 = vmatprep.subr.mxu0 0.0
      %1986 = vmatpush1.msra.mxu0 0.0
      %1987 = vmatprep.subr.mxu0 0.0
      %1988 = vmatpush1.msra.mxu0 0.0
      %1989 = vmatprep.subr.mxu0 0.0
      %1990 = vmatpush1.msra.mxu0 0.0
      %1991 = vmatprep.subr.mxu0 0.0
      %1992 = vmatpush1.msra.mxu0 0.0
      %1993 = vmatprep.subr.mxu0 0.0
      %1994 = vmatpush1.msra.mxu0 0.0
      %1995 = vmatprep.subr.mxu0 0.0
      %1996 = vmatpush1.msra.mxu0 0.0
      %1997 = vmatprep.subr.mxu0 0.0
      %1998 = vmatpush1.msra.mxu0 0.0
      %1999 = vmatprep.subr.mxu0 0.0
      %2000 = vmatpush1.msra.mxu0 0.0
      %2001 = vmatprep.subr.mxu0 0.0
      %2002 = vmatpush1.msra.mxu0 0.0
      %2003 = vmatprep.mubr.f32.mxu0 0.0
      %2004 = vmatmul.mubr.f32.gmra.mrb[0].mxu0 %v1937
      %v2005 = vpop.f32.mrb[0].mxu0
      %v2006 = vadd.f32 0.0, %v2005
      %v2007 = vpop.f32.mrb[0].mxu0
      %2008 = vdwg.mxu0
      %v2010 = vsel %vm810, %v2006, 0
      %2012 = vmatprep.subr.mxu0 0.0
      %2013 = vmatpush1.msra.mxu0 %v2010
      %2014 = vmatprep.subr.mxu0 0.0
      %2015 = vmatpush1.msra.mxu0 0.0
      %2016 = vmatprep.subr.mxu0 0.0
      %2017 = vmatpush1.msra.mxu0 0.0
      %2018 = vmatprep.subr.mxu0 0.0
      %2019 = vmatpush1.msra.mxu0 0.0
      %2020 = vmatprep.subr.mxu0 0.0
      %2021 = vmatpush1.msra.mxu0 0.0
      %2022 = vmatprep.subr.mxu0 0.0
      %2023 = vmatpush1.msra.mxu0 0.0
      %2024 = vmatprep.subr.mxu0 0.0
      %2025 = vmatpush1.msra.mxu0 0.0
      %2026 = vmatprep.subr.mxu0 0.0
      %2027 = vmatpush1.msra.mxu0 0.0
      %2028 = vmatprep.subr.mxu0 0.0
      %2029 = vmatpush1.msra.mxu0 0.0
      %2030 = vmatprep.subr.mxu0 0.0
      %2031 = vmatpush1.msra.mxu0 0.0
      %2032 = vmatprep.subr.mxu0 0.0
      %2033 = vmatpush1.msra.mxu0 0.0
      %2034 = vmatprep.subr.mxu0 0.0
      %2035 = vmatpush1.msra.mxu0 0.0
      %2036 = vmatprep.subr.mxu0 0.0
      %2037 = vmatpush1.msra.mxu0 0.0
      %2038 = vmatprep.subr.mxu0 0.0
      %2039 = vmatpush1.msra.mxu0 0.0
      %2040 = vmatprep.subr.mxu0 0.0
      %2041 = vmatpush1.msra.mxu0 0.0
      %2042 = vmatprep.subr.mxu0 0.0
      %2043 = vmatpush1.msra.mxu0 0.0
      %2044 = vmatprep.subr.mxu0 0.0
      %2045 = vmatpush1.msra.mxu0 0.0
      %2046 = vmatprep.subr.mxu0 0.0
      %2047 = vmatpush1.msra.mxu0 0.0
      %2048 = vmatprep.subr.mxu0 0.0
      %2049 = vmatpush1.msra.mxu0 0.0
      %2050 = vmatprep.subr.mxu0 0.0
      %2051 = vmatpush1.msra.mxu0 0.0
      %2052 = vmatprep.subr.mxu0 0.0
      %2053 = vmatpush1.msra.mxu0 0.0
      %2054 = vmatprep.subr.mxu0 0.0
      %2055 = vmatpush1.msra.mxu0 0.0
      %2056 = vmatprep.subr.mxu0 0.0
      %2057 = vmatpush1.msra.mxu0 0.0
      %2058 = vmatprep.subr.mxu0 0.0
      %2059 = vmatpush1.msra.mxu0 0.0
      %2060 = vmatprep.subr.mxu0 0.0
      %2061 = vmatpush1.msra.mxu0 0.0
      %2062 = vmatprep.subr.mxu0 0.0
      %2063 = vmatpush1.msra.mxu0 0.0
      %2064 = vmatprep.subr.mxu0 0.0
      %2065 = vmatpush1.msra.mxu0 0.0
      %2066 = vmatprep.subr.mxu0 0.0
      %2067 = vmatpush1.msra.mxu0 0.0
      %2068 = vmatprep.subr.mxu0 0.0
      %2069 = vmatpush1.msra.mxu0 0.0
      %2070 = vmatprep.subr.mxu0 0.0
      %2071 = vmatpush1.msra.mxu0 0.0
      %2072 = vmatprep.subr.mxu0 0.0
      %2073 = vmatpush1.msra.mxu0 0.0
      %2074 = vmatprep.subr.mxu0 0.0
      %2075 = vmatpush1.msra.mxu0 0.0
      %2076 = vmatprep.mubr.f32.mxu0 0.0
      %2077 = vmatmul.mubr.f32.gmra.mrb[0].mxu0 %v805
      %v2078 = vpop.f32.mrb[0].mxu0
      %v2079 = vadd.f32 0.0, %v2078
      %v2080 = vpop.f32.mrb[0].mxu0
      %2081 = vmatprep.mubr.f32.mxu0 0.0
      %2082 = vmatmul.mubr.f32.gmra.mrb[0].mxu0 %v808
      %v2083 = vpop.f32.mrb[0].mxu0
      %v2084 = vadd.f32 0.0, %v2083
      %v2085 = vpop.f32.mrb[0].mxu0
      %2086 = vdwg.mxu0
      %v2087 = vsub.f32 %v1782, %v2079
      %v2088 = vsub.f32 %v1787, %v2084
      %v2089 = vmul.f32 %v2087, %v2087
      %v2090 = vmul.f32 %v2088, %v2088
      %2091 = vmatprep.subr.mxu0 0.0
      %2092 = vmatpush1.msra.mxu0 %v2089
      %2093 = vmatprep.subr.mxu0 0.0
      %2094 = vmatpush1.msra.mxu0 %v2090
      %2095 = vmatprep.subr.mxu0 0.0
      %2096 = vmatpush1.msra.mxu0 0.0
      %2097 = vmatprep.subr.mxu0 0.0
      %2098 = vmatpush1.msra.mxu0 0.0
      %2099 = vmatprep.subr.mxu0 0.0
      %2100 = vmatpush1.msra.mxu0 0.0
      %2101 = vmatprep.subr.mxu0 0.0
      %2102 = vmatpush1.msra.mxu0 0.0
      %2103 = vmatprep.subr.mxu0 0.0
      %2104 = vmatpush1.msra.mxu0 0.0
      %2105 = vmatprep.subr.mxu0 0.0
      %2106 = vmatpush1.msra.mxu0 0.0
      %2107 = vmatprep.subr.mxu0 0.0
      %2108 = vmatpush1.msra.mxu0 0.0
      %2109 = vmatprep.subr.mxu0 0.0
      %2110 = vmatpush1.msra.mxu0 0.0
      %2111 = vmatprep.subr.mxu0 0.0
      %2112 = vmatpush1.msra.mxu0 0.0
      %2113 = vmatprep.subr.mxu0 0.0
      %2114 = vmatpush1.msra.mxu0 0.0
      %2115 = vmatprep.subr.mxu0 0.0
      %2116 = vmatpush1.msra.mxu0 0.0
      %2117 = vmatprep.subr.mxu0 0.0
      %2118 = vmatpush1.msra.mxu0 0.0
      %2119 = vmatprep.subr.mxu0 0.0
      %2120 = vmatpush1.msra.mxu0 0.0
      %2121 = vmatprep.subr.mxu0 0.0
      %2122 = vmatpush1.msra.mxu0 0.0
      %2123 = vmatprep.subr.mxu0 0.0
      %2124 = vmatpush1.msra.mxu0 0.0
      %2125 = vmatprep.subr.mxu0 0.0
      %2126 = vmatpush1.msra.mxu0 0.0
      %2127 = vmatprep.subr.mxu0 0.0
      %2128 = vmatpush1.msra.mxu0 0.0
      %2129 = vmatprep.subr.mxu0 0.0
      %2130 = vmatpush1.msra.mxu0 0.0
      %2131 = vmatprep.subr.mxu0 0.0
      %2132 = vmatpush1.msra.mxu0 0.0
      %2133 = vmatprep.subr.mxu0 0.0
      %2134 = vmatpush1.msra.mxu0 0.0
      %2135 = vmatprep.subr.mxu0 0.0
      %2136 = vmatpush1.msra.mxu0 0.0
      %2137 = vmatprep.subr.mxu0 0.0
      %2138 = vmatpush1.msra.mxu0 0.0
      %2139 = vmatprep.subr.mxu0 0.0
      %2140 = vmatpush1.msra.mxu0 0.0
      %2141 = vmatprep.subr.mxu0 0.0
      %2142 = vmatpush1.msra.mxu0 0.0
      %2143 = vmatprep.subr.mxu0 0.0
      %2144 = vmatpush1.msra.mxu0 0.0
      %2145 = vmatprep.subr.mxu0 0.0
      %2146 = vmatpush1.msra.mxu0 0.0
      %2147 = vmatprep.subr.mxu0 0.0
      %2148 = vmatpush1.msra.mxu0 0.0
      %2149 = vmatprep.subr.mxu0 0.0
      %2150 = vmatpush1.msra.mxu0 0.0
      %2151 = vmatprep.subr.mxu0 0.0
      %2152 = vmatpush1.msra.mxu0 0.0
      %2153 = vmatprep.subr.mxu0 0.0
      %2154 = vmatpush1.msra.mxu0 0.0
      %2155 = vmatprep.mubr.f32.mxu0 0.0
      %2156 = vmatmul.mubr.f32.gmra.mrb[0].mxu0 %v987
      %v2157 = vpop.f32.mrb[0].mxu0
      %v2158 = vadd.f32 0.0, %v2157
      %v2159 = vpop.f32.mrb[0].mxu0
      %2160 = vdwg.mxu0
      %v2162 = vsel %vm1059, %v2158, 0
      %2164 = vmatprep.subr.mxu0 0.0
      %2165 = vmatpush1.msra.mxu0 %v638
      %2166 = vmatprep.subr.mxu0 0.0
      %2167 = vmatpush1.msra.mxu0 0.0
      %2168 = vmatprep.subr.mxu0 0.0
      %2169 = vmatpush1.msra.mxu0 0.0
      %2170 = vmatprep.subr.mxu0 0.0
      %2171 = vmatpush1.msra.mxu0 0.0
      %2172 = vmatprep.subr.mxu0 0.0
      %2173 = vmatpush1.msra.mxu0 0.0
      %2174 = vmatprep.subr.mxu0 0.0
      %2175 = vmatpush1.msra.mxu0 0.0
      %2176 = vmatprep.subr.mxu0 0.0
      %2177 = vmatpush1.msra.mxu0 0.0
      %2178 = vmatprep.subr.mxu0 0.0
      %2179 = vmatpush1.msra.mxu0 0.0
      %2180 = vmatprep.subr.mxu0 0.0
      %2181 = vmatpush1.msra.mxu0 0.0
      %2182 = vmatprep.subr.mxu0 0.0
      %2183 = vmatpush1.msra.mxu0 0.0
      %2184 = vmatprep.subr.mxu0 0.0
      %2185 = vmatpush1.msra.mxu0 0.0
      %2186 = vmatprep.subr.mxu0 0.0
      %2187 = vmatpush1.msra.mxu0 0.0
      %2188 = vmatprep.subr.mxu0 0.0
      %2189 = vmatpush1.msra.mxu0 0.0
      %2190 = vmatprep.subr.mxu0 0.0
      %2191 = vmatpush1.msra.mxu0 0.0
      %2192 = vmatprep.subr.mxu0 0.0
      %2193 = vmatpush1.msra.mxu0 0.0
      %2194 = vmatprep.subr.mxu0 0.0
      %2195 = vmatpush1.msra.mxu0 0.0
      %2196 = vmatprep.subr.mxu0 0.0
      %2197 = vmatpush1.msra.mxu0 0.0
      %2198 = vmatprep.subr.mxu0 0.0
      %2199 = vmatpush1.msra.mxu0 0.0
      %2200 = vmatprep.subr.mxu0 0.0
      %2201 = vmatpush1.msra.mxu0 0.0
      %2202 = vmatprep.subr.mxu0 0.0
      %2203 = vmatpush1.msra.mxu0 0.0
      %2204 = vmatprep.subr.mxu0 0.0
      %2205 = vmatpush1.msra.mxu0 0.0
      %2206 = vmatprep.subr.mxu0 0.0
      %2207 = vmatpush1.msra.mxu0 0.0
      %2208 = vmatprep.subr.mxu0 0.0
      %2209 = vmatpush1.msra.mxu0 0.0
      %2210 = vmatprep.subr.mxu0 0.0
      %2211 = vmatpush1.msra.mxu0 0.0
      %2212 = vmatprep.subr.mxu0 0.0
      %2213 = vmatpush1.msra.mxu0 0.0
      %2214 = vmatprep.subr.mxu0 0.0
      %2215 = vmatpush1.msra.mxu0 0.0
      %2216 = vmatprep.subr.mxu0 0.0
      %2217 = vmatpush1.msra.mxu0 0.0
      %2218 = vmatprep.subr.mxu0 0.0
      %2219 = vmatpush1.msra.mxu0 0.0
      %2220 = vmatprep.subr.mxu0 0.0
      %2221 = vmatpush1.msra.mxu0 0.0
      %2222 = vmatprep.subr.mxu0 0.0
      %2223 = vmatpush1.msra.mxu0 0.0
      %2224 = vmatprep.subr.mxu0 0.0
      %2225 = vmatpush1.msra.mxu0 0.0
      %2226 = vmatprep.subr.mxu0 0.0
      %2227 = vmatpush1.msra.mxu0 0.0
      %2228 = vmatprep.mubr.f32.mxu0 0.0
      %2229 = vmatmul.mubr.f32.gmra.mrb[0].mxu0 %v2162
      %v2230 = vpop.f32.mrb[0].mxu0
      %v2231 = vadd.f32 0.0, %v2230
      %v2232 = vpop.f32.mrb[0].mxu0
      %2233 = vdwg.mxu0
      %v2234 = vmul.f32 %v2231, %v1133
      %v2235 = vadd.f32 %v2234, 1e-05
      %v2236 = vrsqrt.pop %v2235
      %v2238 = vsel %vm1059, %v2236, 0
      %2240 = vmatprep.subr.mxu0 0.0
      %2241 = vmatpush1.msra.mxu0 %v639
      %2242 = vmatprep.subr.mxu0 0.0
      %2243 = vmatpush1.msra.mxu0 0.0
      %2244 = vmatprep.subr.mxu0 0.0
      %2245 = vmatpush1.msra.mxu0 0.0
      %2246 = vmatprep.subr.mxu0 0.0
      %2247 = vmatpush1.msra.mxu0 0.0
      %2248 = vmatprep.subr.mxu0 0.0
      %2249 = vmatpush1.msra.mxu0 0.0
      %2250 = vmatprep.subr.mxu0 0.0
      %2251 = vmatpush1.msra.mxu0 0.0
      %2252 = vmatprep.subr.mxu0 0.0
      %2253 = vmatpush1.msra.mxu0 0.0
      %2254 = vmatprep.subr.mxu0 0.0
      %2255 = vmatpush1.msra.mxu0 0.0
      %2256 = vmatprep.subr.mxu0 0.0
      %2257 = vmatpush1.msra.mxu0 0.0
      %2258 = vmatprep.subr.mxu0 0.0
      %2259 = vmatpush1.msra.mxu0 0.0
      %2260 = vmatprep.subr.mxu0 0.0
      %2261 = vmatpush1.msra.mxu0 0.0
      %2262 = vmatprep.subr.mxu0 0.0
      %2263 = vmatpush1.msra.mxu0 0.0
      %2264 = vmatprep.subr.mxu0 0.0
      %2265 = vmatpush1.msra.mxu0 0.0
      %2266 = vmatprep.subr.mxu0 0.0
      %2267 = vmatpush1.msra.mxu0 0.0
      %2268 = vmatprep.subr.mxu0 0.0
      %2269 = vmatpush1.msra.mxu0 0.0
      %2270 = vmatprep.subr.mxu0 0.0
      %2271 = vmatpush1.msra.mxu0 0.0
      %2272 = vmatprep.subr.mxu0 0.0
      %2273 = vmatpush1.msra.mxu0 0.0
      %2274 = vmatprep.subr.mxu0 0.0
      %2275 = vmatpush1.msra.mxu0 0.0
      %2276 = vmatprep.subr.mxu0 0.0
      %2277 = vmatpush1.msra.mxu0 0.0
      %2278 = vmatprep.subr.mxu0 0.0
      %2279 = vmatpush1.msra.mxu0 0.0
      %2280 = vmatprep.subr.mxu0 0.0
      %2281 = vmatpush1.msra.mxu0 0.0
      %2282 = vmatprep.subr.mxu0 0.0
      %2283 = vmatpush1.msra.mxu0 0.0
      %2284 = vmatprep.subr.mxu0 0.0
      %2285 = vmatpush1.msra.mxu0 0.0
      %2286 = vmatprep.subr.mxu0 0.0
      %2287 = vmatpush1.msra.mxu0 0.0
      %2288 = vmatprep.subr.mxu0 0.0
      %2289 = vmatpush1.msra.mxu0 0.0
      %2290 = vmatprep.subr.mxu0 0.0
      %2291 = vmatpush1.msra.mxu0 0.0
      %2292 = vmatprep.subr.mxu0 0.0
      %2293 = vmatpush1.msra.mxu0 0.0
      %2294 = vmatprep.subr.mxu0 0.0
      %2295 = vmatpush1.msra.mxu0 0.0
      %2296 = vmatprep.subr.mxu0 0.0
      %2297 = vmatpush1.msra.mxu0 0.0
      %2298 = vmatprep.subr.mxu0 0.0
      %2299 = vmatpush1.msra.mxu0 0.0
      %2300 = vmatprep.subr.mxu0 0.0
      %2301 = vmatpush1.msra.mxu0 0.0
      %2302 = vmatprep.subr.mxu0 0.0
      %2303 = vmatpush1.msra.mxu0 0.0
      %2304 = vmatprep.mubr.f32.mxu0 0.0
      %2305 = vmatmul.mubr.f32.gmra.mrb[0].mxu0 %v2238
      %v2306 = vpop.f32.mrb[0].mxu0
      %v2307 = vadd.f32 0.0, %v2306
      %v2308 = vpop.f32.mrb[0].mxu0
      %2309 = vdwg.mxu0
      %v2311 = vsel %vm810, %v2307, 0
      %2313 = vmatprep.subr.mxu0 0.0
      %2314 = vmatpush1.msra.mxu0 %v2311
      %2315 = vmatprep.subr.mxu0 0.0
      %2316 = vmatpush1.msra.mxu0 0.0
      %2317 = vmatprep.subr.mxu0 0.0
      %2318 = vmatpush1.msra.mxu0 0.0
      %2319 = vmatprep.subr.mxu0 0.0
      %2320 = vmatpush1.msra.mxu0 0.0
      %2321 = vmatprep.subr.mxu0 0.0
      %2322 = vmatpush1.msra.mxu0 0.0
      %2323 = vmatprep.subr.mxu0 0.0
      %2324 = vmatpush1.msra.mxu0 0.0
      %2325 = vmatprep.subr.mxu0 0.0
      %2326 = vmatpush1.msra.mxu0 0.0
      %2327 = vmatprep.subr.mxu0 0.0
      %2328 = vmatpush1.msra.mxu0 0.0
      %2329 = vmatprep.subr.mxu0 0.0
      %2330 = vmatpush1.msra.mxu0 0.0
      %2331 = vmatprep.subr.mxu0 0.0
      %2332 = vmatpush1.msra.mxu0 0.0
      %2333 = vmatprep.subr.mxu0 0.0
      %2334 = vmatpush1.msra.mxu0 0.0
      %2335 = vmatprep.subr.mxu0 0.0
      %2336 = vmatpush1.msra.mxu0 0.0
      %2337 = vmatprep.subr.mxu0 0.0
      %2338 = vmatpush1.msra.mxu0 0.0
      %2339 = vmatprep.subr.mxu0 0.0
      %2340 = vmatpush1.msra.mxu0 0.0
      %2341 = vmatprep.subr.mxu0 0.0
      %2342 = vmatpush1.msra.mxu0 0.0
      %2343 = vmatprep.subr.mxu0 0.0
      %2344 = vmatpush1.msra.mxu0 0.0
      %2345 = vmatprep.subr.mxu0 0.0
      %2346 = vmatpush1.msra.mxu0 0.0
      %2347 = vmatprep.subr.mxu0 0.0
      %2348 = vmatpush1.msra.mxu0 0.0
      %2349 = vmatprep.subr.mxu0 0.0
      %2350 = vmatpush1.msra.mxu0 0.0
      %2351 = vmatprep.subr.mxu0 0.0
      %2352 = vmatpush1.msra.mxu0 0.0
      %2353 = vmatprep.subr.mxu0 0.0
      %2354 = vmatpush1.msra.mxu0 0.0
      %2355 = vmatprep.subr.mxu0 0.0
      %2356 = vmatpush1.msra.mxu0 0.0
      %2357 = vmatprep.subr.mxu0 0.0
      %2358 = vmatpush1.msra.mxu0 0.0
      %2359 = vmatprep.subr.mxu0 0.0
      %2360 = vmatpush1.msra.mxu0 0.0
      %2361 = vmatprep.subr.mxu0 0.0
      %2362 = vmatpush1.msra.mxu0 0.0
      %2363 = vmatprep.subr.mxu0 0.0
      %2364 = vmatpush1.msra.mxu0 0.0
      %2365 = vmatprep.subr.mxu0 0.0
      %2366 = vmatpush1.msra.mxu0 0.0
      %2367 = vmatprep.subr.mxu0 0.0
      %2368 = vmatpush1.msra.mxu0 0.0
      %2369 = vmatprep.subr.mxu0 0.0
      %2370 = vmatpush1.msra.mxu0 0.0
      %2371 = vmatprep.subr.mxu0 0.0
      %2372 = vmatpush1.msra.mxu0 0.0
      %2373 = vmatprep.subr.mxu0 0.0
      %2374 = vmatpush1.msra.mxu0 0.0
      %2375 = vmatprep.subr.mxu0 0.0
      %2376 = vmatpush1.msra.mxu0 0.0
      %2377 = vmatprep.mubr.f32.mxu0 0.0
      %2378 = vmatmul.mubr.f32.gmra.mrb[0].mxu0 %v805
      %v2379 = vpop.f32.mrb[0].mxu0
      %v2380 = vadd.f32 0.0, %v2379
      %v2381 = vpop.f32.mrb[0].mxu0
      %2382 = vmatprep.mubr.f32.mxu0 0.0
      %2383 = vmatmul.mubr.f32.gmra.mrb[0].mxu0 %v808
      %v2384 = vpop.f32.mrb[0].mxu0
      %v2385 = vadd.f32 0.0, %v2384
      %v2386 = vpop.f32.mrb[0].mxu0
      %2387 = vdwg.mxu0
      %v2388 = vmul.f32 %v2087, %v2380
      %v2389 = vmul.f32 %v2088, %v2385
      %v2391 = vlaneseq
      %v2392 = vshrl.u32 %v2391, 7
      %v2393 = vsub.s32 0, %v2392
      %v2394 = vrot.slane %v1790, %v2393
      %v2396 = vmul.f32 %v2388, %v2394
      %v2397 = vmul.f32 %v2389, %v2394
      %v2399 = vlaneseq
      %v2400 = vshrl.u32 %v2399, 7
      %v2401 = vsub.s32 0, %v2400
      %v2402 = vrot.slane %v1791, %v2401
      %v2404 = vadd.f32 %v2396, %v2402
      %v2405 = vadd.f32 %v2397, %v2402
      %v2406 = vxor.u32 %v2404, 2147483648
      %v2407 = vxor.u32 %v2405, 2147483648
      %v2408 = vmul.f32 %v2406, 1.442695
      %v2409 = vpow.pop %v2408
      %v2410 = vmul.f32 %v2407, 1.442695
      %v2411 = vpow.pop %v2410
      %v2412 = vadd.f32 %v2409, 1.0
      %v2413 = vadd.f32 %v2411, 1.0
      %v2414 = vrcp.pop %v2412
      %v2415 = vmul.f32 1.0, %v2414
      %v2416 = vrcp.pop %v2413
      %v2417 = vmul.f32 1.0, %v2416
      %v2418 = vmul.f32 %v2404, %v2415
      %v2419 = vmul.f32 %v2405, %v2417
      %v2420 = vld [vmem:[%s10] sm:$0xf]
      %v2422 = vsel %vm904, %v2420, 0
      %2424 = vmatprep.subr.mxu0 0.0
      %2425 = vmatpush1.msra.mxu0 %v2422
      %2426 = vmatprep.subr.mxu0 0.0
      %2427 = vmatpush1.msra.mxu0 0.0
      %2428 = vmatprep.subr.mxu0 0.0
      %2429 = vmatpush1.msra.mxu0 0.0
      %2430 = vmatprep.subr.mxu0 0.0
      %2431 = vmatpush1.msra.mxu0 0.0
      %2432 = vmatprep.subr.mxu0 0.0
      %2433 = vmatpush1.msra.mxu0 0.0
      %2434 = vmatprep.subr.mxu0 0.0
      %2435 = vmatpush1.msra.mxu0 0.0
      %2436 = vmatprep.subr.mxu0 0.0
      %2437 = vmatpush1.msra.mxu0 0.0
      %2438 = vmatprep.subr.mxu0 0.0
      %2439 = vmatpush1.msra.mxu0 0.0
      %2440 = vmatprep.subr.mxu0 0.0
      %2441 = vmatpush1.msra.mxu0 0.0
      %2442 = vmatprep.subr.mxu0 0.0
      %2443 = vmatpush1.msra.mxu0 0.0
      %2444 = vmatprep.subr.mxu0 0.0
      %2445 = vmatpush1.msra.mxu0 0.0
      %2446 = vmatprep.subr.mxu0 0.0
      %2447 = vmatpush1.msra.mxu0 0.0
      %2448 = vmatprep.subr.mxu0 0.0
      %2449 = vmatpush1.msra.mxu0 0.0
      %2450 = vmatprep.subr.mxu0 0.0
      %2451 = vmatpush1.msra.mxu0 0.0
      %2452 = vmatprep.subr.mxu0 0.0
      %2453 = vmatpush1.msra.mxu0 0.0
      %2454 = vmatprep.subr.mxu0 0.0
      %2455 = vmatpush1.msra.mxu0 0.0
      %2456 = vmatprep.subr.mxu0 0.0
      %2457 = vmatpush1.msra.mxu0 0.0
      %2458 = vmatprep.subr.mxu0 0.0
      %2459 = vmatpush1.msra.mxu0 0.0
      %2460 = vmatprep.subr.mxu0 0.0
      %2461 = vmatpush1.msra.mxu0 0.0
      %2462 = vmatprep.subr.mxu0 0.0
      %2463 = vmatpush1.msra.mxu0 0.0
      %2464 = vmatprep.subr.mxu0 0.0
      %2465 = vmatpush1.msra.mxu0 0.0
      %2466 = vmatprep.subr.mxu0 0.0
      %2467 = vmatpush1.msra.mxu0 0.0
      %2468 = vmatprep.subr.mxu0 0.0
      %2469 = vmatpush1.msra.mxu0 0.0
      %2470 = vmatprep.subr.mxu0 0.0
      %2471 = vmatpush1.msra.mxu0 0.0
      %2472 = vmatprep.subr.mxu0 0.0
      %2473 = vmatpush1.msra.mxu0 0.0
      %2474 = vmatprep.subr.mxu0 0.0
      %2475 = vmatpush1.msra.mxu0 0.0
      %2476 = vmatprep.subr.mxu0 0.0
      %2477 = vmatpush1.msra.mxu0 0.0
      %2478 = vmatprep.subr.mxu0 0.0
      %2479 = vmatpush1.msra.mxu0 0.0
      %2480 = vmatprep.subr.mxu0 0.0
      %2481 = vmatpush1.msra.mxu0 0.0
      %2482 = vmatprep.subr.mxu0 0.0
      %2483 = vmatpush1.msra.mxu0 0.0
      %2484 = vmatprep.subr.mxu0 0.0
      %2485 = vmatpush1.msra.mxu0 0.0
      %2486 = vmatprep.subr.mxu0 0.0
      %2487 = vmatpush1.msra.mxu0 0.0
      %2488 = vmatprep.mubr.f32.mxu0 0.0
      %2489 = vmatmul.mubr.f32.gmra.mrb[0].mxu0 %v899
      %v2490 = vpop.f32.mrb[0].mxu0
      %v2491 = vadd.f32 0.0, %v2490
      %v2492 = vpop.f32.mrb[0].mxu0
      %2493 = vmatprep.mubr.f32.mxu0 0.0
      %2494 = vmatmul.mubr.f32.gmra.mrb[0].mxu0 %v902
      %v2495 = vpop.f32.mrb[0].mxu0
      %v2496 = vadd.f32 0.0, %v2495
      %v2497 = vpop.f32.mrb[0].mxu0
      %2498 = vdwg.mxu0
      %v2499 = vadd.f32 %v2418, %v2491
      %v2500 = vadd.f32 %v2419, %v2496
      %v2501 = vld [vmem:[%s11] sm:$0x1]
      %v2503 = vlaneseq
      %v2504 = vshrl.u32 %v2503, 7
      %v2505 = vsub.s32 0, %v2504
      %v2506 = vrot.slane %v2501, %v2505
      %v2508 = vadd.f32 %v2499, %v2506
      %v2509 = vadd.f32 %v2500, %v2506
      %2510 = vst.msk [vmem:[%s631] sm:$0xff] %vm1059, %v2508
      %2511 = vst.msk [vmem:[%s631 + $0x8] sm:$0xff] %vm1059, %v2509
      %s2512 = smul.u32 2, %s31
      %p2513 = scmp.lt.s32.totalorder %s2512, 3
      %s2514 = scalar_select %p2513, %s2512, 3
      %s2515 = smul.addr %s2514, 8
      %s2516 = scalar_lea.vmem %s20, %s2515
      // Predicated region
      $region101: #{tpu_custom_call.1} parent=99 // pred_check
        %p2517 = pneg %p474
      $region102: #{tpu_custom_call.1} parent=99 // pred_check_branch
        %2519 = sbr.rel (%p2517) target = $region104
      $region103: #{tpu_custom_call.1} parent=99 // pred_region
        %s2520 = smul.u32 2, %s31
      $region104: #{tpu_custom_call.1} parent=99 // pred_fallthru
        _
    $region100: #{tpu_custom_call.1} parent=5 // pred_fallthru
      _
    %p2521 = scmp.le.s32.totalorder 2, %s26
    // Predicated region
    $region105: #{tpu_custom_call.1} parent=5 // pred_check
      %p2522 = pneg %p2521
    $region106: #{tpu_custom_call.1} parent=5 // pred_check_branch
      %2524 = sbr.rel (%p2522) target = $region108
    $region107: #{tpu_custom_call.1} parent=5 // pred_region
      %s2525 = ssub.s32 %s26, 2
      // Predicated region
      $region109: #{tpu_custom_call.1} parent=107 // pred_check
        %p2526 = pneg %p480
      $region110: #{tpu_custom_call.1} parent=107 // pred_check_branch
        %2528 = sbr.rel (%p2526) target = $region112
      $region111: #{tpu_custom_call.1} parent=107 // pred_region
        %s2529 = smul.u32 2, %s32
        %p2530 = scmp.lt.s32.totalorder %s2529, 3
        %s2531 = scalar_select %p2530, %s2529, 3
        %s2532 = smul.addr %s2531, 8
        %s2533 = scalar_lea.vmem %s20, %s2532
      $region112: #{tpu_custom_call.1} parent=107 // pred_fallthru
        _
    $region108: #{tpu_custom_call.1} parent=5 // pred_fallthru
      _
  $region6: #{tpu_custom_call.1} parent=0 // loop_footer
    %s30 = sadd.s32 1, %s26
  $region7: #{tpu_custom_call.1} parent=0 // loop_footer_branch
    %25 = sbr.rel target = $region3
  $region8: #{tpu_custom_call.1} parent=0 // loop_exit
    _

</llo_original>
